<compile_context>
chip_gen: v7x
topology: tpu7x:2x2x1
jax: 0.10.0
libtpu: 0.0.40
codegen_flags: <defaults>
</compile_context>

<pallas_src>
import functools

import numpy as np

import jax
import jax.numpy as jnp
from jax.experimental import pallas as pl
from jax.experimental.pallas import tpu as pltpu


CP = 8                         # padded mid / per-branch output channels (one sublane tile)
K2, K3 = 3, 5                  # kernel sizes of the two branches
T2, T3 = K2 * K2, K3 * K3      # 9, 25 taps
ROWS_P = (T2 + T3) * CP + CP   # 280 patch rows = tap slabs + ones slab (bias)
_NB_MAX = 8                    # batch elements per grid step (~5 MB VMEM working set)


def _decoder_kernel(img_w, x_ref, w1_ref, wbig_ref, mask_ref, out_ref, p_ref):
    """One grid step = NB batch elements; channels-first, lanes = NB*H*W."""
    L = x_ref.shape[1]

    # ---- fused 1x1 convT for both branches (+ bias via the ones row of x) ----
    h_all = jnp.tanh(jnp.dot(w1_ref[...], x_ref[...],
                             preferred_element_type=jnp.float32))      # (16, L)
    h2 = h_all[:CP, :]           # branch-2 hidden (rows 4..7 are zero padding)
    h3 = h_all[CP:, :]           # branch-3 hidden

    def fill_taps(h, K, row0):
        # masked, shifted copies of h written into the patch scratch, 8 rows/tap
        for kh in range(K):
            for kw in range(K):
                t = kh * K + kw
                s = (kh - K // 2) * img_w + (kw - K // 2)   # flat spatial shift
                shifted = h if s == 0 else pltpu.roll(h, shift=(-s) % L, axis=1)
                r = row0 + t * CP
                p_ref[r:r + CP, :] = shifted * mask_ref[r:r + CP, :]

    fill_taps(h2, K2, 0)
    fill_taps(h3, K3, T2 * CP)
    p_ref[(T2 + T3) * CP:, :] = jnp.ones((CP, L), jnp.float32)   # bias "tap"

    # ---- block-diagonal second stage: rows 0:8 = 3x3 branch, 8:16 = 5x5 branch ----
    a = jnp.dot(wbig_ref[...], p_ref[...], preferred_element_type=jnp.float32)
    out_ref[:CP, :] = jnp.tanh(a[:CP, :])
    out_ref[CP:, :] = 0.5 * jnp.tanh(0.5 * a[CP:, :]) + 0.5      # sigmoid


# ----------------------------------------------------------------------------
# Static mask constants: 1 where a tap reads inside its own image (also zeroes
# positions where the circular lane roll would cross a row / batch boundary).
# ----------------------------------------------------------------------------
def _tap_masks(K, H, W):
    iy = np.repeat(np.arange(H), W)
    ix = np.tile(np.arange(W), H)
    rows = []
    for kh in range(K):
        for kw in range(K):
            dy, dx = kh - K // 2, kw - K // 2
            valid = ((iy + dy >= 0) & (iy + dy < H) &
                     (ix + dx >= 0) & (ix + dx < W))
            rows.append(valid.astype(np.float32))
    return np.stack(rows)                                   # (K*K, H*W)


def _build_mask(H, W, nb):
    m = np.concatenate([_tap_masks(K2, H, W), _tap_masks(K3, H, W)], axis=0)
    m = np.repeat(m, CP, axis=0)                            # (272, HW): 8 rows / tap
    m = np.tile(m, (1, nb))                                 # (272, nb*HW): batch-major lanes
    return jnp.asarray(m)


def _chunking(n):
    """Split batch into >=2 grid steps (v7x dual-core) of at most _NB_MAX each."""
    if n <= 1:
        return 1, max(n, 1)
    chunks = max(2, -(-n // _NB_MAX))
    nb = -(-n // chunks)
    chunks = -(-n // nb)
    return chunks, nb


@functools.partial(jax.jit, static_argnames=("cout",))
def decoder_forward(x_nchw, w1_aug, w_big, *, cout):
    """x_nchw: (N, 2*output_size, H, W) f32 -> (df2, df3), both (N, cout, H, W)."""
    N, Cin2, H, W = x_nchw.shape
    HW = H * W
    num_chunks, nb = _chunking(N)
    if (nb * HW) % 128 != 0:          # lane tiling must be 128-aligned; else 1 full block
        num_chunks, nb = 1, N
    n_pad = num_chunks * nb
    L = nb * HW
    cin_pad = w1_aug.shape[1]

    # channels-first, batch folded onto the lane axis (lane index = b*HW + pos)
    x = x_nchw.astype(jnp.float32).reshape(N, Cin2, HW)
    if n_pad > N:
        x = jnp.concatenate(
            [x, jnp.zeros((n_pad - N, Cin2, HW), jnp.float32)], axis=0)
    x_cf = jnp.transpose(x, (1, 0, 2)).reshape(Cin2, n_pad * HW)
    ones_row = jnp.ones((1, n_pad * HW), jnp.float32)        # bias fold
    pad_rows = jnp.zeros((cin_pad - Cin2 - 1, n_pad * HW), jnp.float32)
    x_aug = jnp.concatenate([x_cf, ones_row, pad_rows], axis=0)   # (cin_pad, n_pad*HW)

    mask = _build_mask(H, W, nb)                             # (272, L) constant

    out = pl.pallas_call(
        functools.partial(_decoder_kernel, W),
        out_shape=jax.ShapeDtypeStruct((2 * CP, n_pad * HW), jnp.float32),
        grid_spec=pltpu.PrefetchScalarGridSpec(
            num_scalar_prefetch=0,
            grid=(num_chunks,),
            in_specs=[
                pl.BlockSpec((cin_pad, L), lambda c: (0, c)),
                pl.BlockSpec(w1_aug.shape, lambda c: (0, 0)),
                pl.BlockSpec(w_big.shape, lambda c: (0, 0)),
                pl.BlockSpec(mask.shape, lambda c: (0, 0)),
            ],
            out_specs=pl.BlockSpec((2 * CP, L), lambda c: (0, c)),
            scratch_shapes=[pltpu.VMEM((ROWS_P, L), jnp.float32)],
        ),
        compiler_params=pltpu.CompilerParams(
            dimension_semantics=("parallel",)),   # chunks independent; v7x uses both TCs
    )(x_aug, w1_aug, w_big, mask)

    out = jnp.transpose(out.reshape(2 * CP, n_pad, HW), (1, 0, 2))[:N]   # (N, 16, HW)
    df2 = out[:, :cout, :].reshape(N, cout, H, W)
    df3 = out[:, CP:CP + cout, :].reshape(N, cout, H, W)
    return df2, df3


# ----------------------------------------------------------------------------
# Parameter glue. PyTorch ConvTranspose2d weights: (in_ch, out_ch, kH, kW).
# For stride=1 they equal a standard conv with the spatially-flipped kernel,
# swapped channel axes and padding (k-1-p) == k//2 ("same").
# ----------------------------------------------------------------------------
def _convt_to_hwio(w):
    # (in, out, kh, kw) -> flip spatial -> (kh, kw, in, out)
    return jnp.transpose(w[:, :, ::-1, ::-1], (2, 3, 0, 1))


def make_decoder_params(output_size, input_size, key):
    """Raw PyTorch-layout weights for the Decoder module."""
    ks = jax.random.split(key, 8)
    u = lambda k, s: jax.random.uniform(k, s, jnp.float32, -0.2, 0.2)
    wt2a = u(ks[0], (2 * output_size, output_size, 1, 1))
    bt2a = u(ks[1], (output_size,))
    wt2b = u(ks[2], (output_size, input_size, 3, 3))
    bt2b = u(ks[3], (input_size,))
    wt3a = u(ks[4], (2 * output_size, output_size, 1, 1))
    bt3a = u(ks[5], (output_size,))
    wt3b = u(ks[6], (output_size, input_size, 5, 5))
    bt3b = u(ks[7], (input_size,))
    return (wt2a, bt2a, wt2b, bt2b, wt3a, bt3a, wt3b, bt3b)


def prepare_kernel_params(torch_params):
    """PyTorch-layout weights -> padded, fused kernel-layout matrices."""
    wt2a, bt2a, wt2b, bt2b, wt3a, bt3a, wt3b, bt3b = torch_params
    Cin2 = wt2a.shape[0]
    Cmid = wt2a.shape[1]
    Cout = wt2b.shape[1]
    assert Cmid <= CP and Cout <= CP, "kernel assumes <= 8 channels per branch"
    cin_pad = -(-(Cin2 + 1) // 8) * 8             # data rows + ones row, 8-aligned

    # Fused 1x1 stage (both branches), bias folded, 8 rows per branch.
    w1 = np.zeros((2 * CP, cin_pad), np.float32)
    w1[:Cmid, :Cin2] = np.asarray(wt2a)[:, :, 0, 0].T
    w1[:Cmid, Cin2] = np.asarray(bt2a)
    w1[CP:CP + Cmid, :Cin2] = np.asarray(wt3a)[:, :, 0, 0].T
    w1[CP:CP + Cmid, Cin2] = np.asarray(bt3a)

    # Block-diagonal second stage: (16, 9*8 + 25*8 + 8) = (16, 280).
    wbig = np.zeros((2 * CP, ROWS_P), np.float32)
    w2h = np.asarray(_convt_to_hwio(wt2b))        # (3, 3, Cmid, Cout)
    w3h = np.asarray(_convt_to_hwio(wt3b))        # (5, 5, Cmid, Cout)
    for t in range(T2):
        kh, kw = divmod(t, K2)
        wbig[:Cout, t * CP:t * CP + Cmid] = w2h[kh, kw].T
    off = T2 * CP
    for t in range(T3):
        kh, kw = divmod(t, K3)
        wbig[CP:CP + Cout, off + t * CP:off + t * CP + Cmid] = w3h[kh, kw].T
    wbig[:Cout, (T2 + T3) * CP] = np.asarray(bt2b)            # bias column
    wbig[CP:CP + Cout, (T2 + T3) * CP] = np.asarray(bt3b)
    return jnp.asarray(w1), jnp.asarray(wbig), int(Cout)


# Pure-JAX reference built directly from the PyTorch-layout weights.
def _ref_forward(x_nchw, torch_params):
    wt2a, bt2a, wt2b, bt2b, wt3a, bt3a, wt3b, bt3b = torch_params
    x = jnp.transpose(x_nchw, (0, 2, 3, 1))
    dn = ('NHWC', 'HWIO', 'NHWC')

    def conv(inp, w_hwio, b, pad):
        y = jax.lax.conv_general_dilated(inp, w_hwio, (1, 1),
                                         [(pad, pad), (pad, pad)],
                                         dimension_numbers=dn)
        return y + b.reshape(1, 1, 1, -1)

    h2 = jnp.tanh(conv(x, _convt_to_hwio(wt2a), bt2a, 0))
    df2 = jnp.tanh(conv(h2, _convt_to_hwio(wt2b), bt2b, 1))
    h3 = jnp.tanh(conv(x, _convt_to_hwio(wt3a), bt3a, 0))
    df3 = jax.nn.sigmoid(conv(h3, _convt_to_hwio(wt3b), bt3b, 2))
    return (jnp.transpose(df2, (0, 3, 1, 2)),
            jnp.transpose(df3, (0, 3, 1, 2)))


if __name__ == "__main__":
    output_size = 4   # -> Decoder input has 2*output_size = 8 channels
    input_size = 4    # channels of df2 / df3
    N, H, W = 2, 16, 16

    key = jax.random.PRNGKey(0)
    k_x, k_p = jax.random.split(key)
    x = jax.random.normal(k_x, (N, 2 * output_size, H, W), jnp.float32)

    torch_params = make_decoder_params(output_size, input_size, k_p)
    w1_aug, w_big, cout = prepare_kernel_params(torch_params)

    df2, df3 = decoder_forward(x, w1_aug, w_big, cout=cout)
    jax.block_until_ready((df2, df3))

    r2, r3 = _ref_forward(x, torch_params)
    assert df2.shape == (N, input_size, H, W) and df3.shape == (N, input_size, H, W)
    assert jnp.allclose(df2, r2, atol=1e-4, rtol=1e-4), float(jnp.abs(df2 - r2).max())
    assert jnp.allclose(df3, r3, atol=1e-4, rtol=1e-4), float(jnp.abs(df3 - r3).max())
    print("KERNEL_OK")
</pallas_src>

<mosaic_0001>
module attributes {stable_mosaic.version = 11 : i64} {
  func.func @_decoder_kernel(%arg0: i32, %arg1: memref<16x256xf32, #tpu.memory_space<vmem>>, %arg2: memref<16x16xf32, #tpu.memory_space<vmem>>, %arg3: memref<16x280xf32, #tpu.memory_space<vmem>>, %arg4: memref<272x256xf32, #tpu.memory_space<vmem>>, %arg5: memref<16x256xf32, #tpu.memory_space<vmem>>, %arg6: memref<280x256xf32, #tpu.memory_space<vmem>>) attributes {dimension_semantics = [#tpu.dimension_semantics<parallel>], iteration_bounds = array<i64: 2>, scalar_prefetch = 0 : i64, scratch_operands = 1 : i64, tpu.core_type = #tpu.core_type<tc>, window_params = [{transform_indices = @transform_0, window_bounds = array<i64: 16, 256>}, {pipeline_mode = #tpu.pipeline_mode<synchronous>, transform_indices = @transform_1, window_bounds = array<i64: 16, 16>}, {pipeline_mode = #tpu.pipeline_mode<synchronous>, transform_indices = @transform_2, window_bounds = array<i64: 16, 280>}, {pipeline_mode = #tpu.pipeline_mode<synchronous>, transform_indices = @transform_3, window_bounds = array<i64: 272, 256>}, {transform_indices = @transform_4, window_bounds = array<i64: 16, 256>}]} {
    %c0 = arith.constant 0 : index
    %c0_0 = arith.constant 0 : index
    %0 = vector.load %arg2[%c0, %c0_0] : memref<16x16xf32, #tpu.memory_space<vmem>>, vector<16x16xf32>
    %c0_1 = arith.constant 0 : index
    %c0_2 = arith.constant 0 : index
    %1 = vector.load %arg1[%c0_1, %c0_2] : memref<16x256xf32, #tpu.memory_space<vmem>>, vector<16x256xf32>
    %cst = arith.constant dense<0.000000e+00> : vector<16x256xf32>
    %2 = tpu.matmul %0, %1, %cst {dimension_numbers = #tpu.dot_dimension_numbers<[1], [0], [0], [1], [0, 0, 1, 1], [], []>} : vector<16x16xf32>, vector<16x256xf32>, vector<16x256xf32> -> vector<16x256xf32>
    %3 = math.tanh %2 : vector<16x256xf32>
    %4 = vector.extract_strided_slice %3 {offsets = [0, 0], sizes = [8, 256], strides = [1, 1]} : vector<16x256xf32> to vector<8x256xf32>
    %5 = vector.extract_strided_slice %3 {offsets = [8, 0], sizes = [8, 256], strides = [1, 1]} : vector<16x256xf32> to vector<8x256xf32>
    %c17_i32 = arith.constant 17 : i32
    %6 = tpu.dynamic_rotate %4 by %c17_i32 dim 1 : vector<8x256xf32>, i32 -> vector<8x256xf32>
    %c0_3 = arith.constant 0 : index
    %c0_4 = arith.constant 0 : index
    %7 = vector.load %arg4[%c0_3, %c0_4] : memref<272x256xf32, #tpu.memory_space<vmem>>, vector<8x256xf32>
    %8 = arith.mulf %6, %7 : vector<8x256xf32>
    %c0_5 = arith.constant 0 : index
    %c0_6 = arith.constant 0 : index
    %9 = vector.load %arg6[%c0_5, %c0_6] : memref<280x256xf32, #tpu.memory_space<vmem>>, vector<8x256xf32>
    tpu.vector_store %arg6[%c0_5, %c0_6], %8 {strides = array<i32>} : memref<280x256xf32, #tpu.memory_space<vmem>>, vector<8x256xf32>,
    %c16_i32 = arith.constant 16 : i32
    %10 = tpu.dynamic_rotate %4 by %c16_i32 dim 1 : vector<8x256xf32>, i32 -> vector<8x256xf32>
    %c8 = arith.constant 8 : index
    %c0_7 = arith.constant 0 : index
    %11 = vector.load %arg4[%c8, %c0_7] : memref<272x256xf32, #tpu.memory_space<vmem>>, vector<8x256xf32>
    %12 = arith.mulf %10, %11 : vector<8x256xf32>
    %c8_8 = arith.constant 8 : index
    %c0_9 = arith.constant 0 : index
    %13 = vector.load %arg6[%c8_8, %c0_9] : memref<280x256xf32, #tpu.memory_space<vmem>>, vector<8x256xf32>
    tpu.vector_store %arg6[%c8_8, %c0_9], %12 {strides = array<i32>} : memref<280x256xf32, #tpu.memory_space<vmem>>, vector<8x256xf32>,
    %c15_i32 = arith.constant 15 : i32
    %14 = tpu.dynamic_rotate %4 by %c15_i32 dim 1 : vector<8x256xf32>, i32 -> vector<8x256xf32>
    %c16 = arith.constant 16 : index
    %c0_10 = arith.constant 0 : index
    %15 = vector.load %arg4[%c16, %c0_10] : memref<272x256xf32, #tpu.memory_space<vmem>>, vector<8x256xf32>
    %16 = arith.mulf %14, %15 : vector<8x256xf32>
    %c16_11 = arith.constant 16 : index
    %c0_12 = arith.constant 0 : index
    %17 = vector.load %arg6[%c16_11, %c0_12] : memref<280x256xf32, #tpu.memory_space<vmem>>, vector<8x256xf32>
    tpu.vector_store %arg6[%c16_11, %c0_12], %16 {strides = array<i32>} : memref<280x256xf32, #tpu.memory_space<vmem>>, vector<8x256xf32>,
    %c1_i32 = arith.constant 1 : i32
    %18 = tpu.dynamic_rotate %4 by %c1_i32 dim 1 : vector<8x256xf32>, i32 -> vector<8x256xf32>
    %c24 = arith.constant 24 : index
    %c0_13 = arith.constant 0 : index
    %19 = vector.load %arg4[%c24, %c0_13] : memref<272x256xf32, #tpu.memory_space<vmem>>, vector<8x256xf32>
    %20 = arith.mulf %18, %19 : vector<8x256xf32>
    %c24_14 = arith.constant 24 : index
    %c0_15 = arith.constant 0 : index
    %21 = vector.load %arg6[%c24_14, %c0_15] : memref<280x256xf32, #tpu.memory_space<vmem>>, vector<8x256xf32>
    tpu.vector_store %arg6[%c24_14, %c0_15], %20 {strides = array<i32>} : memref<280x256xf32, #tpu.memory_space<vmem>>, vector<8x256xf32>,
    %c32 = arith.constant 32 : index
    %c0_16 = arith.constant 0 : index
    %22 = vector.load %arg4[%c32, %c0_16] : memref<272x256xf32, #tpu.memory_space<vmem>>, vector<8x256xf32>
    %23 = arith.mulf %4, %22 : vector<8x256xf32>
    %c32_17 = arith.constant 32 : index
    %c0_18 = arith.constant 0 : index
    %24 = vector.load %arg6[%c32_17, %c0_18] : memref<280x256xf32, #tpu.memory_space<vmem>>, vector<8x256xf32>
    tpu.vector_store %arg6[%c32_17, %c0_18], %23 {strides = array<i32>} : memref<280x256xf32, #tpu.memory_space<vmem>>, vector<8x256xf32>,
    %c255_i32 = arith.constant 255 : i32
    %25 = tpu.dynamic_rotate %4 by %c255_i32 dim 1 : vector<8x256xf32>, i32 -> vector<8x256xf32>
    %c40 = arith.constant 40 : index
    %c0_19 = arith.constant 0 : index
    %26 = vector.load %arg4[%c40, %c0_19] : memref<272x256xf32, #tpu.memory_space<vmem>>, vector<8x256xf32>
    %27 = arith.mulf %25, %26 : vector<8x256xf32>
    %c40_20 = arith.constant 40 : index
    %c0_21 = arith.constant 0 : index
    %28 = vector.load %arg6[%c40_20, %c0_21] : memref<280x256xf32, #tpu.memory_space<vmem>>, vector<8x256xf32>
    tpu.vector_store %arg6[%c40_20, %c0_21], %27 {strides = array<i32>} : memref<280x256xf32, #tpu.memory_space<vmem>>, vector<8x256xf32>,
    %c241_i32 = arith.constant 241 : i32
    %29 = tpu.dynamic_rotate %4 by %c241_i32 dim 1 : vector<8x256xf32>, i32 -> vector<8x256xf32>
    %c48 = arith.constant 48 : index
    %c0_22 = arith.constant 0 : index
    %30 = vector.load %arg4[%c48, %c0_22] : memref<272x256xf32, #tpu.memory_space<vmem>>, vector<8x256xf32>
    %31 = arith.mulf %29, %30 : vector<8x256xf32>
    %c48_23 = arith.constant 48 : index
    %c0_24 = arith.constant 0 : index
    %32 = vector.load %arg6[%c48_23, %c0_24] : memref<280x256xf32, #tpu.memory_space<vmem>>, vector<8x256xf32>
    tpu.vector_store %arg6[%c48_23, %c0_24], %31 {strides = array<i32>} : memref<280x256xf32, #tpu.memory_space<vmem>>, vector<8x256xf32>,
    %c240_i32 = arith.constant 240 : i32
    %33 = tpu.dynamic_rotate %4 by %c240_i32 dim 1 : vector<8x256xf32>, i32 -> vector<8x256xf32>
    %c56 = arith.constant 56 : index
    %c0_25 = arith.constant 0 : index
    %34 = vector.load %arg4[%c56, %c0_25] : memref<272x256xf32, #tpu.memory_space<vmem>>, vector<8x256xf32>
    %35 = arith.mulf %33, %34 : vector<8x256xf32>
    %c56_26 = arith.constant 56 : index
    %c0_27 = arith.constant 0 : index
    %36 = vector.load %arg6[%c56_26, %c0_27] : memref<280x256xf32, #tpu.memory_space<vmem>>, vector<8x256xf32>
    tpu.vector_store %arg6[%c56_26, %c0_27], %35 {strides = array<i32>} : memref<280x256xf32, #tpu.memory_space<vmem>>, vector<8x256xf32>,
    %c239_i32 = arith.constant 239 : i32
    %37 = tpu.dynamic_rotate %4 by %c239_i32 dim 1 : vector<8x256xf32>, i32 -> vector<8x256xf32>
    %c64 = arith.constant 64 : index
    %c0_28 = arith.constant 0 : index
    %38 = vector.load %arg4[%c64, %c0_28] : memref<272x256xf32, #tpu.memory_space<vmem>>, vector<8x256xf32>
    %39 = arith.mulf %37, %38 : vector<8x256xf32>
    %c64_29 = arith.constant 64 : index
    %c0_30 = arith.constant 0 : index
    %40 = vector.load %arg6[%c64_29, %c0_30] : memref<280x256xf32, #tpu.memory_space<vmem>>, vector<8x256xf32>
    tpu.vector_store %arg6[%c64_29, %c0_30], %39 {strides = array<i32>} : memref<280x256xf32, #tpu.memory_space<vmem>>, vector<8x256xf32>,
    %c34_i32 = arith.constant 34 : i32
    %41 = tpu.dynamic_rotate %5 by %c34_i32 dim 1 : vector<8x256xf32>, i32 -> vector<8x256xf32>
    %c72 = arith.constant 72 : index
    %c0_31 = arith.constant 0 : index
    %42 = vector.load %arg4[%c72, %c0_31] : memref<272x256xf32, #tpu.memory_space<vmem>>, vector<8x256xf32>
    %43 = arith.mulf %41, %42 : vector<8x256xf32>
    %c72_32 = arith.constant 72 : index
    %c0_33 = arith.constant 0 : index
    %44 = vector.load %arg6[%c72_32, %c0_33] : memref<280x256xf32, #tpu.memory_space<vmem>>, vector<8x256xf32>
    tpu.vector_store %arg6[%c72_32, %c0_33], %43 {strides = array<i32>} : memref<280x256xf32, #tpu.memory_space<vmem>>, vector<8x256xf32>,
    %c33_i32 = arith.constant 33 : i32
    %45 = tpu.dynamic_rotate %5 by %c33_i32 dim 1 : vector<8x256xf32>, i32 -> vector<8x256xf32>
    %c80 = arith.constant 80 : index
    %c0_34 = arith.constant 0 : index
    %46 = vector.load %arg4[%c80, %c0_34] : memref<272x256xf32, #tpu.memory_space<vmem>>, vector<8x256xf32>
    %47 = arith.mulf %45, %46 : vector<8x256xf32>
    %c80_35 = arith.constant 80 : index
    %c0_36 = arith.constant 0 : index
    %48 = vector.load %arg6[%c80_35, %c0_36] : memref<280x256xf32, #tpu.memory_space<vmem>>, vector<8x256xf32>
    tpu.vector_store %arg6[%c80_35, %c0_36], %47 {strides = array<i32>} : memref<280x256xf32, #tpu.memory_space<vmem>>, vector<8x256xf32>,
    %c32_i32 = arith.constant 32 : i32
    %49 = tpu.dynamic_rotate %5 by %c32_i32 dim 1 : vector<8x256xf32>, i32 -> vector<8x256xf32>
    %c88 = arith.constant 88 : index
    %c0_37 = arith.constant 0 : index
    %50 = vector.load %arg4[%c88, %c0_37] : memref<272x256xf32, #tpu.memory_space<vmem>>, vector<8x256xf32>
    %51 = arith.mulf %49, %50 : vector<8x256xf32>
    %c88_38 = arith.constant 88 : index
    %c0_39 = arith.constant 0 : index
    %52 = vector.load %arg6[%c88_38, %c0_39] : memref<280x256xf32, #tpu.memory_space<vmem>>, vector<8x256xf32>
    tpu.vector_store %arg6[%c88_38, %c0_39], %51 {strides = array<i32>} : memref<280x256xf32, #tpu.memory_space<vmem>>, vector<8x256xf32>,
    %c31_i32 = arith.constant 31 : i32
    %53 = tpu.dynamic_rotate %5 by %c31_i32 dim 1 : vector<8x256xf32>, i32 -> vector<8x256xf32>
    %c96 = arith.constant 96 : index
    %c0_40 = arith.constant 0 : index
    %54 = vector.load %arg4[%c96, %c0_40] : memref<272x256xf32, #tpu.memory_space<vmem>>, vector<8x256xf32>
    %55 = arith.mulf %53, %54 : vector<8x256xf32>
    %c96_41 = arith.constant 96 : index
    %c0_42 = arith.constant 0 : index
    %56 = vector.load %arg6[%c96_41, %c0_42] : memref<280x256xf32, #tpu.memory_space<vmem>>, vector<8x256xf32>
    tpu.vector_store %arg6[%c96_41, %c0_42], %55 {strides = array<i32>} : memref<280x256xf32, #tpu.memory_space<vmem>>, vector<8x256xf32>,
    %c30_i32 = arith.constant 30 : i32
    %57 = tpu.dynamic_rotate %5 by %c30_i32 dim 1 : vector<8x256xf32>, i32 -> vector<8x256xf32>
    %c104 = arith.constant 104 : index
    %c0_43 = arith.constant 0 : index
    %58 = vector.load %arg4[%c104, %c0_43] : memref<272x256xf32, #tpu.memory_space<vmem>>, vector<8x256xf32>
    %59 = arith.mulf %57, %58 : vector<8x256xf32>
    %c104_44 = arith.constant 104 : index
    %c0_45 = arith.constant 0 : index
    %60 = vector.load %arg6[%c104_44, %c0_45] : memref<280x256xf32, #tpu.memory_space<vmem>>, vector<8x256xf32>
    tpu.vector_store %arg6[%c104_44, %c0_45], %59 {strides = array<i32>} : memref<280x256xf32, #tpu.memory_space<vmem>>, vector<8x256xf32>,
    %c18_i32 = arith.constant 18 : i32
    %61 = tpu.dynamic_rotate %5 by %c18_i32 dim 1 : vector<8x256xf32>, i32 -> vector<8x256xf32>
    %c112 = arith.constant 112 : index
    %c0_46 = arith.constant 0 : index
    %62 = vector.load %arg4[%c112, %c0_46] : memref<272x256xf32, #tpu.memory_space<vmem>>, vector<8x256xf32>
    %63 = arith.mulf %61, %62 : vector<8x256xf32>
    %c112_47 = arith.constant 112 : index
    %c0_48 = arith.constant 0 : index
    %64 = vector.load %arg6[%c112_47, %c0_48] : memref<280x256xf32, #tpu.memory_space<vmem>>, vector<8x256xf32>
    tpu.vector_store %arg6[%c112_47, %c0_48], %63 {strides = array<i32>} : memref<280x256xf32, #tpu.memory_space<vmem>>, vector<8x256xf32>,
    %c17_i32_49 = arith.constant 17 : i32
    %65 = tpu.dynamic_rotate %5 by %c17_i32_49 dim 1 : vector<8x256xf32>, i32 -> vector<8x256xf32>
    %c120 = arith.constant 120 : index
    %c0_50 = arith.constant 0 : index
    %66 = vector.load %arg4[%c120, %c0_50] : memref<272x256xf32, #tpu.memory_space<vmem>>, vector<8x256xf32>
    %67 = arith.mulf %65, %66 : vector<8x256xf32>
    %c120_51 = arith.constant 120 : index
    %c0_52 = arith.constant 0 : index
    %68 = vector.load %arg6[%c120_51, %c0_52] : memref<280x256xf32, #tpu.memory_space<vmem>>, vector<8x256xf32>
    tpu.vector_store %arg6[%c120_51, %c0_52], %67 {strides = array<i32>} : memref<280x256xf32, #tpu.memory_space<vmem>>, vector<8x256xf32>,
    %c16_i32_53 = arith.constant 16 : i32
    %69 = tpu.dynamic_rotate %5 by %c16_i32_53 dim 1 : vector<8x256xf32>, i32 -> vector<8x256xf32>
    %c128 = arith.constant 128 : index
    %c0_54 = arith.constant 0 : index
    %70 = vector.load %arg4[%c128, %c0_54] : memref<272x256xf32, #tpu.memory_space<vmem>>, vector<8x256xf32>
    %71 = arith.mulf %69, %70 : vector<8x256xf32>
    %c128_55 = arith.constant 128 : index
    %c0_56 = arith.constant 0 : index
    %72 = vector.load %arg6[%c128_55, %c0_56] : memref<280x256xf32, #tpu.memory_space<vmem>>, vector<8x256xf32>
    tpu.vector_store %arg6[%c128_55, %c0_56], %71 {strides = array<i32>} : memref<280x256xf32, #tpu.memory_space<vmem>>, vector<8x256xf32>,
    %c15_i32_57 = arith.constant 15 : i32
    %73 = tpu.dynamic_rotate %5 by %c15_i32_57 dim 1 : vector<8x256xf32>, i32 -> vector<8x256xf32>
    %c136 = arith.constant 136 : index
    %c0_58 = arith.constant 0 : index
    %74 = vector.load %arg4[%c136, %c0_58] : memref<272x256xf32, #tpu.memory_space<vmem>>, vector<8x256xf32>
    %75 = arith.mulf %73, %74 : vector<8x256xf32>
    %c136_59 = arith.constant 136 : index
    %c0_60 = arith.constant 0 : index
    %76 = vector.load %arg6[%c136_59, %c0_60] : memref<280x256xf32, #tpu.memory_space<vmem>>, vector<8x256xf32>
    tpu.vector_store %arg6[%c136_59, %c0_60], %75 {strides = array<i32>} : memref<280x256xf32, #tpu.memory_space<vmem>>, vector<8x256xf32>,
    %c14_i32 = arith.constant 14 : i32
    %77 = tpu.dynamic_rotate %5 by %c14_i32 dim 1 : vector<8x256xf32>, i32 -> vector<8x256xf32>
    %c144 = arith.constant 144 : index
    %c0_61 = arith.constant 0 : index
    %78 = vector.load %arg4[%c144, %c0_61] : memref<272x256xf32, #tpu.memory_space<vmem>>, vector<8x256xf32>
    %79 = arith.mulf %77, %78 : vector<8x256xf32>
    %c144_62 = arith.constant 144 : index
    %c0_63 = arith.constant 0 : index
    %80 = vector.load %arg6[%c144_62, %c0_63] : memref<280x256xf32, #tpu.memory_space<vmem>>, vector<8x256xf32>
    tpu.vector_store %arg6[%c144_62, %c0_63], %79 {strides = array<i32>} : memref<280x256xf32, #tpu.memory_space<vmem>>, vector<8x256xf32>,
    %c2_i32 = arith.constant 2 : i32
    %81 = tpu.dynamic_rotate %5 by %c2_i32 dim 1 : vector<8x256xf32>, i32 -> vector<8x256xf32>
    %c152 = arith.constant 152 : index
    %c0_64 = arith.constant 0 : index
    %82 = vector.load %arg4[%c152, %c0_64] : memref<272x256xf32, #tpu.memory_space<vmem>>, vector<8x256xf32>
    %83 = arith.mulf %81, %82 : vector<8x256xf32>
    %c152_65 = arith.constant 152 : index
    %c0_66 = arith.constant 0 : index
    %84 = vector.load %arg6[%c152_65, %c0_66] : memref<280x256xf32, #tpu.memory_space<vmem>>, vector<8x256xf32>
    tpu.vector_store %arg6[%c152_65, %c0_66], %83 {strides = array<i32>} : memref<280x256xf32, #tpu.memory_space<vmem>>, vector<8x256xf32>,
    %c1_i32_67 = arith.constant 1 : i32
    %85 = tpu.dynamic_rotate %5 by %c1_i32_67 dim 1 : vector<8x256xf32>, i32 -> vector<8x256xf32>
    %c160 = arith.constant 160 : index
    %c0_68 = arith.constant 0 : index
    %86 = vector.load %arg4[%c160, %c0_68] : memref<272x256xf32, #tpu.memory_space<vmem>>, vector<8x256xf32>
    %87 = arith.mulf %85, %86 : vector<8x256xf32>
    %c160_69 = arith.constant 160 : index
    %c0_70 = arith.constant 0 : index
    %88 = vector.load %arg6[%c160_69, %c0_70] : memref<280x256xf32, #tpu.memory_space<vmem>>, vector<8x256xf32>
    tpu.vector_store %arg6[%c160_69, %c0_70], %87 {strides = array<i32>} : memref<280x256xf32, #tpu.memory_space<vmem>>, vector<8x256xf32>,
    %c168 = arith.constant 168 : index
    %c0_71 = arith.constant 0 : index
    %89 = vector.load %arg4[%c168, %c0_71] : memref<272x256xf32, #tpu.memory_space<vmem>>, vector<8x256xf32>
    %90 = arith.mulf %5, %89 : vector<8x256xf32>
    %c168_72 = arith.constant 168 : index
    %c0_73 = arith.constant 0 : index
    %91 = vector.load %arg6[%c168_72, %c0_73] : memref<280x256xf32, #tpu.memory_space<vmem>>, vector<8x256xf32>
    tpu.vector_store %arg6[%c168_72, %c0_73], %90 {strides = array<i32>} : memref<280x256xf32, #tpu.memory_space<vmem>>, vector<8x256xf32>,
    %c255_i32_74 = arith.constant 255 : i32
    %92 = tpu.dynamic_rotate %5 by %c255_i32_74 dim 1 : vector<8x256xf32>, i32 -> vector<8x256xf32>
    %c176 = arith.constant 176 : index
    %c0_75 = arith.constant 0 : index
    %93 = vector.load %arg4[%c176, %c0_75] : memref<272x256xf32, #tpu.memory_space<vmem>>, vector<8x256xf32>
    %94 = arith.mulf %92, %93 : vector<8x256xf32>
    %c176_76 = arith.constant 176 : index
    %c0_77 = arith.constant 0 : index
    %95 = vector.load %arg6[%c176_76, %c0_77] : memref<280x256xf32, #tpu.memory_space<vmem>>, vector<8x256xf32>
    tpu.vector_store %arg6[%c176_76, %c0_77], %94 {strides = array<i32>} : memref<280x256xf32, #tpu.memory_space<vmem>>, vector<8x256xf32>,
    %c254_i32 = arith.constant 254 : i32
    %96 = tpu.dynamic_rotate %5 by %c254_i32 dim 1 : vector<8x256xf32>, i32 -> vector<8x256xf32>
    %c184 = arith.constant 184 : index
    %c0_78 = arith.constant 0 : index
    %97 = vector.load %arg4[%c184, %c0_78] : memref<272x256xf32, #tpu.memory_space<vmem>>, vector<8x256xf32>
    %98 = arith.mulf %96, %97 : vector<8x256xf32>
    %c184_79 = arith.constant 184 : index
    %c0_80 = arith.constant 0 : index
    %99 = vector.load %arg6[%c184_79, %c0_80] : memref<280x256xf32, #tpu.memory_space<vmem>>, vector<8x256xf32>
    tpu.vector_store %arg6[%c184_79, %c0_80], %98 {strides = array<i32>} : memref<280x256xf32, #tpu.memory_space<vmem>>, vector<8x256xf32>,
    %c242_i32 = arith.constant 242 : i32
    %100 = tpu.dynamic_rotate %5 by %c242_i32 dim 1 : vector<8x256xf32>, i32 -> vector<8x256xf32>
    %c192 = arith.constant 192 : index
    %c0_81 = arith.constant 0 : index
    %101 = vector.load %arg4[%c192, %c0_81] : memref<272x256xf32, #tpu.memory_space<vmem>>, vector<8x256xf32>
    %102 = arith.mulf %100, %101 : vector<8x256xf32>
    %c192_82 = arith.constant 192 : index
    %c0_83 = arith.constant 0 : index
    %103 = vector.load %arg6[%c192_82, %c0_83] : memref<280x256xf32, #tpu.memory_space<vmem>>, vector<8x256xf32>
    tpu.vector_store %arg6[%c192_82, %c0_83], %102 {strides = array<i32>} : memref<280x256xf32, #tpu.memory_space<vmem>>, vector<8x256xf32>,
    %c241_i32_84 = arith.constant 241 : i32
    %104 = tpu.dynamic_rotate %5 by %c241_i32_84 dim 1 : vector<8x256xf32>, i32 -> vector<8x256xf32>
    %c200 = arith.constant 200 : index
    %c0_85 = arith.constant 0 : index
    %105 = vector.load %arg4[%c200, %c0_85] : memref<272x256xf32, #tpu.memory_space<vmem>>, vector<8x256xf32>
    %106 = arith.mulf %104, %105 : vector<8x256xf32>
    %c200_86 = arith.constant 200 : index
    %c0_87 = arith.constant 0 : index
    %107 = vector.load %arg6[%c200_86, %c0_87] : memref<280x256xf32, #tpu.memory_space<vmem>>, vector<8x256xf32>
    tpu.vector_store %arg6[%c200_86, %c0_87], %106 {strides = array<i32>} : memref<280x256xf32, #tpu.memory_space<vmem>>, vector<8x256xf32>,
    %c240_i32_88 = arith.constant 240 : i32
    %108 = tpu.dynamic_rotate %5 by %c240_i32_88 dim 1 : vector<8x256xf32>, i32 -> vector<8x256xf32>
    %c208 = arith.constant 208 : index
    %c0_89 = arith.constant 0 : index
    %109 = vector.load %arg4[%c208, %c0_89] : memref<272x256xf32, #tpu.memory_space<vmem>>, vector<8x256xf32>
    %110 = arith.mulf %108, %109 : vector<8x256xf32>
    %c208_90 = arith.constant 208 : index
    %c0_91 = arith.constant 0 : index
    %111 = vector.load %arg6[%c208_90, %c0_91] : memref<280x256xf32, #tpu.memory_space<vmem>>, vector<8x256xf32>
    tpu.vector_store %arg6[%c208_90, %c0_91], %110 {strides = array<i32>} : memref<280x256xf32, #tpu.memory_space<vmem>>, vector<8x256xf32>,
    %c239_i32_92 = arith.constant 239 : i32
    %112 = tpu.dynamic_rotate %5 by %c239_i32_92 dim 1 : vector<8x256xf32>, i32 -> vector<8x256xf32>
    %c216 = arith.constant 216 : index
    %c0_93 = arith.constant 0 : index
    %113 = vector.load %arg4[%c216, %c0_93] : memref<272x256xf32, #tpu.memory_space<vmem>>, vector<8x256xf32>
    %114 = arith.mulf %112, %113 : vector<8x256xf32>
    %c216_94 = arith.constant 216 : index
    %c0_95 = arith.constant 0 : index
    %115 = vector.load %arg6[%c216_94, %c0_95] : memref<280x256xf32, #tpu.memory_space<vmem>>, vector<8x256xf32>
    tpu.vector_store %arg6[%c216_94, %c0_95], %114 {strides = array<i32>} : memref<280x256xf32, #tpu.memory_space<vmem>>, vector<8x256xf32>,
    %c238_i32 = arith.constant 238 : i32
    %116 = tpu.dynamic_rotate %5 by %c238_i32 dim 1 : vector<8x256xf32>, i32 -> vector<8x256xf32>
    %c224 = arith.constant 224 : index
    %c0_96 = arith.constant 0 : index
    %117 = vector.load %arg4[%c224, %c0_96] : memref<272x256xf32, #tpu.memory_space<vmem>>, vector<8x256xf32>
    %118 = arith.mulf %116, %117 : vector<8x256xf32>
    %c224_97 = arith.constant 224 : index
    %c0_98 = arith.constant 0 : index
    %119 = vector.load %arg6[%c224_97, %c0_98] : memref<280x256xf32, #tpu.memory_space<vmem>>, vector<8x256xf32>
    tpu.vector_store %arg6[%c224_97, %c0_98], %118 {strides = array<i32>} : memref<280x256xf32, #tpu.memory_space<vmem>>, vector<8x256xf32>,
    %c226_i32 = arith.constant 226 : i32
    %120 = tpu.dynamic_rotate %5 by %c226_i32 dim 1 : vector<8x256xf32>, i32 -> vector<8x256xf32>
    %c232 = arith.constant 232 : index
    %c0_99 = arith.constant 0 : index
    %121 = vector.load %arg4[%c232, %c0_99] : memref<272x256xf32, #tpu.memory_space<vmem>>, vector<8x256xf32>
    %122 = arith.mulf %120, %121 : vector<8x256xf32>
    %c232_100 = arith.constant 232 : index
    %c0_101 = arith.constant 0 : index
    %123 = vector.load %arg6[%c232_100, %c0_101] : memref<280x256xf32, #tpu.memory_space<vmem>>, vector<8x256xf32>
    tpu.vector_store %arg6[%c232_100, %c0_101], %122 {strides = array<i32>} : memref<280x256xf32, #tpu.memory_space<vmem>>, vector<8x256xf32>,
    %c225_i32 = arith.constant 225 : i32
    %124 = tpu.dynamic_rotate %5 by %c225_i32 dim 1 : vector<8x256xf32>, i32 -> vector<8x256xf32>
    %c240 = arith.constant 240 : index
    %c0_102 = arith.constant 0 : index
    %125 = vector.load %arg4[%c240, %c0_102] : memref<272x256xf32, #tpu.memory_space<vmem>>, vector<8x256xf32>
    %126 = arith.mulf %124, %125 : vector<8x256xf32>
    %c240_103 = arith.constant 240 : index
    %c0_104 = arith.constant 0 : index
    %127 = vector.load %arg6[%c240_103, %c0_104] : memref<280x256xf32, #tpu.memory_space<vmem>>, vector<8x256xf32>
    tpu.vector_store %arg6[%c240_103, %c0_104], %126 {strides = array<i32>} : memref<280x256xf32, #tpu.memory_space<vmem>>, vector<8x256xf32>,
    %c224_i32 = arith.constant 224 : i32
    %128 = tpu.dynamic_rotate %5 by %c224_i32 dim 1 : vector<8x256xf32>, i32 -> vector<8x256xf32>
    %c248 = arith.constant 248 : index
    %c0_105 = arith.constant 0 : index
    %129 = vector.load %arg4[%c248, %c0_105] : memref<272x256xf32, #tpu.memory_space<vmem>>, vector<8x256xf32>
    %130 = arith.mulf %128, %129 : vector<8x256xf32>
    %c248_106 = arith.constant 248 : index
    %c0_107 = arith.constant 0 : index
    %131 = vector.load %arg6[%c248_106, %c0_107] : memref<280x256xf32, #tpu.memory_space<vmem>>, vector<8x256xf32>
    tpu.vector_store %arg6[%c248_106, %c0_107], %130 {strides = array<i32>} : memref<280x256xf32, #tpu.memory_space<vmem>>, vector<8x256xf32>,
    %c223_i32 = arith.constant 223 : i32
    %132 = tpu.dynamic_rotate %5 by %c223_i32 dim 1 : vector<8x256xf32>, i32 -> vector<8x256xf32>
    %c256 = arith.constant 256 : index
    %c0_108 = arith.constant 0 : index
    %133 = vector.load %arg4[%c256, %c0_108] : memref<272x256xf32, #tpu.memory_space<vmem>>, vector<8x256xf32>
    %134 = arith.mulf %132, %133 : vector<8x256xf32>
    %c256_109 = arith.constant 256 : index
    %c0_110 = arith.constant 0 : index
    %135 = vector.load %arg6[%c256_109, %c0_110] : memref<280x256xf32, #tpu.memory_space<vmem>>, vector<8x256xf32>
    tpu.vector_store %arg6[%c256_109, %c0_110], %134 {strides = array<i32>} : memref<280x256xf32, #tpu.memory_space<vmem>>, vector<8x256xf32>,
    %c222_i32 = arith.constant 222 : i32
    %136 = tpu.dynamic_rotate %5 by %c222_i32 dim 1 : vector<8x256xf32>, i32 -> vector<8x256xf32>
    %c264 = arith.constant 264 : index
    %c0_111 = arith.constant 0 : index
    %137 = vector.load %arg4[%c264, %c0_111] : memref<272x256xf32, #tpu.memory_space<vmem>>, vector<8x256xf32>
    %138 = arith.mulf %136, %137 : vector<8x256xf32>
    %c264_112 = arith.constant 264 : index
    %c0_113 = arith.constant 0 : index
    %139 = vector.load %arg6[%c264_112, %c0_113] : memref<280x256xf32, #tpu.memory_space<vmem>>, vector<8x256xf32>
    tpu.vector_store %arg6[%c264_112, %c0_113], %138 {strides = array<i32>} : memref<280x256xf32, #tpu.memory_space<vmem>>, vector<8x256xf32>,
    %cst_114 = arith.constant 1.000000e+00 : f32
    %140 = vector.broadcast %cst_114 : f32 to vector<8x256xf32>
    %c272 = arith.constant 272 : index
    %c0_115 = arith.constant 0 : index
    %141 = vector.load %arg6[%c272, %c0_115] : memref<280x256xf32, #tpu.memory_space<vmem>>, vector<8x256xf32>
    tpu.vector_store %arg6[%c272, %c0_115], %140 {strides = array<i32>} : memref<280x256xf32, #tpu.memory_space<vmem>>, vector<8x256xf32>,
    %c0_116 = arith.constant 0 : index
    %c0_117 = arith.constant 0 : index
    %142 = vector.load %arg3[%c0_116, %c0_117] : memref<16x280xf32, #tpu.memory_space<vmem>>, vector<16x280xf32>
    %c0_118 = arith.constant 0 : index
    %c0_119 = arith.constant 0 : index
    %143 = vector.load %arg6[%c0_118, %c0_119] : memref<280x256xf32, #tpu.memory_space<vmem>>, vector<280x256xf32>
    %cst_120 = arith.constant dense<0.000000e+00> : vector<16x256xf32>
    %144 = tpu.matmul %142, %143, %cst_120 {dimension_numbers = #tpu.dot_dimension_numbers<[1], [0], [0], [1], [0, 0, 1, 1], [], []>} : vector<16x280xf32>, vector<280x256xf32>, vector<16x256xf32> -> vector<16x256xf32>
    %145 = vector.extract_strided_slice %144 {offsets = [0, 0], sizes = [8, 256], strides = [1, 1]} : vector<16x256xf32> to vector<8x256xf32>
    %146 = math.tanh %145 : vector<8x256xf32>
    %c0_121 = arith.constant 0 : index
    %c0_122 = arith.constant 0 : index
    %147 = vector.load %arg5[%c0_121, %c0_122] : memref<16x256xf32, #tpu.memory_space<vmem>>, vector<8x256xf32>
    tpu.vector_store %arg5[%c0_121, %c0_122], %146 {strides = array<i32>} : memref<16x256xf32, #tpu.memory_space<vmem>>, vector<8x256xf32>,
    %148 = vector.extract_strided_slice %144 {offsets = [8, 0], sizes = [8, 256], strides = [1, 1]} : vector<16x256xf32> to vector<8x256xf32>
    %cst_123 = arith.constant 5.000000e-01 : f32
    %149 = vector.broadcast %cst_123 : f32 to vector<8x256xf32>
    %150 = arith.mulf %149, %148 : vector<8x256xf32>
    %151 = math.tanh %150 : vector<8x256xf32>
    %cst_124 = arith.constant 5.000000e-01 : f32
    %152 = vector.broadcast %cst_124 : f32 to vector<8x256xf32>
    %153 = arith.mulf %152, %151 : vector<8x256xf32>
    %cst_125 = arith.constant 5.000000e-01 : f32
    %154 = vector.broadcast %cst_125 : f32 to vector<8x256xf32>
    %155 = arith.addf %153, %154 : vector<8x256xf32>
    %c8_126 = arith.constant 8 : index
    %c0_127 = arith.constant 0 : index
    %156 = vector.load %arg5[%c8_126, %c0_127] : memref<16x256xf32, #tpu.memory_space<vmem>>, vector<8x256xf32>
    tpu.vector_store %arg5[%c8_126, %c0_127], %155 {strides = array<i32>} : memref<16x256xf32, #tpu.memory_space<vmem>>, vector<8x256xf32>,
    return
  }
  func.func @transform_0(%arg0: i32) -> (i32, i32) {
    %c0_i32 = arith.constant 0 : i32
    %c0_i32_0 = arith.constant 0 : i32
    return %c0_i32, %arg0 : i32, i32
  }
  func.func @transform_1(%arg0: i32) -> (i32, i32) {
    %c0_i32 = arith.constant 0 : i32
    %c0_i32_0 = arith.constant 0 : i32
    %c0_i32_1 = arith.constant 0 : i32
    return %c0_i32, %c0_i32_0 : i32, i32
  }
  func.func @transform_2(%arg0: i32) -> (i32, i32) {
    %c0_i32 = arith.constant 0 : i32
    %c0_i32_0 = arith.constant 0 : i32
    %c0_i32_1 = arith.constant 0 : i32
    return %c0_i32, %c0_i32_0 : i32, i32
  }
  func.func @transform_3(%arg0: i32) -> (i32, i32) {
    %c0_i32 = arith.constant 0 : i32
    %c0_i32_0 = arith.constant 0 : i32
    %c0_i32_1 = arith.constant 0 : i32
    return %c0_i32, %c0_i32_0 : i32, i32
  }
  func.func @transform_4(%arg0: i32) -> (i32, i32) {
    %c0_i32 = arith.constant 0 : i32
    %c0_i32_0 = arith.constant 0 : i32
    return %c0_i32, %arg0 : i32, i32
  }
}

</mosaic_0001>

<llo_original>
// kernel: decoder_forward.1
$region0: #{decoder_forward.1}
  #allocation0 [shape = 'u32[]', space=smem, size = 0x4, offset = 0x4, fixed_abs, tag = 'smem constant byte address 0x4 - core index']
  #allocation1 [shape = 'u32[144,128]{1,0:T(1,128)}', space=vmem, size = 0x12000, scoped, tag = 'internal scratch']
  #allocation2 [shape = 'f32[280,256]{1,0:T(8,128)}', space=vmem, size = 0x46000, scoped, tag = 'scratch operand']
  %s0 = inlined_call_operand.vmem [shape: f32[16,512], index: 0, kind: input, shape index: {}]
  %s1 = inlined_call_operand.vmem [shape: f32[16,16], index: 1, kind: input, shape index: {}]
  %s2 = inlined_call_operand.vmem [shape: f32[16,280], index: 2, kind: input, shape index: {}]
  %s3 = inlined_call_operand.hbm [shape: f32[272,256], index: 3, kind: input, shape index: {}]
  %s4 = inlined_call_operand.vmem [shape: f32[16,512], index: 4, kind: output, shape index: {}]
  %s5 = sld [smem:[#allocation0]]
  $region95: #{decoder_forward.1} parent=0
    _
  %s7 = ssub.s32 1, %s5
  %s8 = scalar_select 0, %s7, %s5
  $region1: #{decoder_forward.1} parent=0
    #allocation3 [shape = 'u8[32768]{0}', space=vmem, size = 0x8000, scoped, tag = 'input window, operand 0']
    #allocation4 [shape = 'u8[278528]{0}', space=vmem, size = 0x44000, scoped, tag = 'input window, operand 3, single buffered']
    #allocation5 [shape = 's32[2]{0}', space=sflag, size = 0x8, scoped, tag = 'scoped memory for decoder_forward.1']
    #allocation6 [shape = 'u8[32768]{0}', space=vmem, size = 0x8000, scoped, tag = 'output window, operand 0']
    %9 = vsyncpa [#allocation5], 0
    loop: start=0, step=1, limit=4
    $region2: #{decoder_forward.1} parent=1 // loop_pre_header
      _
    $region3: #{decoder_forward.1} parent=1 // loop_header
      %s11 = sphi 0, %s15
      %p12 = scmp.ge.s32.totalorder %s11, 4
      %s21 = sphi 0, %s23
      %s24 = sphi 0, %s21
      %s25 = sphi 0, %s24
      %s41 = sphi 0, %s25
      %s45 = sphi 0, %s45
      %s47 = sphi 0, %s45
      %s48 = sphi 0, %s47
      %s62 = sphi 0, %s48
      %s66 = sphi 0, %s66
      %s68 = sphi 0, %s66
      %s69 = sphi 0, %s68
      %s83 = sphi 0, %s69
      %s87 = sphi 0, %s87
      %s89 = sphi 0, %s87
      %s90 = sphi 0, %s89
      %s104 = sphi 0, %s90
      %s110 = sphi 0, %s112
      %s113 = sphi 0, %s110
      %s114 = sphi 0, %s113
      %s130 = sphi 0, %s114
    $region4: #{decoder_forward.1} parent=1 // loop_header_branch
      %14 = sbr.rel (%p12) target = $region8
    $region5: #{decoder_forward.1} parent=1 // loop_body
      %s16 = ssub.s32 %s11, 1
      %s17 = ssub.s32 %s11, 2
      %s18 = sadd.s32 %s11, 1
      %s19 = ssub.s32 %s11, %s18
      %p20 = scmp.eq.s32.totalorder %s19, 0
      %s22 = sadd.s32 %s21, 1
      %s23 = scalar_select %p20, %s21, %s22
      %p26 = pneg %p20
      %p27 = scmp.eq.s32.totalorder %s11, 1
      %p28 = por %p26, %p27
      %p29 = scmp.ne.s32.totalorder %s21, %s24
      %p30 = scmp.eq.s32.totalorder %s11, 0
      %p31 = por %p29, %p30
      %p32 = scmp.ne.s32.totalorder %s21, %s24
      %p33 = scmp.eq.s32.totalorder %s16, 1
      %p34 = por %p32, %p33
      %p35 = scmp.ne.s32.totalorder %s24, %s25
      %p36 = scmp.eq.s32.totalorder %s16, 0
      %p37 = por %p35, %p36
      %p38 = scmp.ne.s32.totalorder %s24, %s25
      %p39 = scmp.eq.s32.totalorder %s17, 1
      %p40 = por %p38, %p39
      %p42 = scmp.ne.s32.totalorder %s25, %s41
      %p43 = scmp.eq.s32.totalorder %s17, 0
      %p44 = por %p42, %p43
      %s46 = sadd.s32 %s45, 1
      %p49 = scmp.eq.s32.totalorder %s11, 1
      %p50 = scmp.ne.s32.totalorder %s45, %s47
      %p51 = scmp.eq.s32.totalorder %s11, 0
      %p52 = por %p50, %p51
      %p53 = scmp.ne.s32.totalorder %s45, %s47
      %p54 = scmp.eq.s32.totalorder %s16, 1
      %p55 = por %p53, %p54
      %p56 = scmp.ne.s32.totalorder %s47, %s48
      %p57 = scmp.eq.s32.totalorder %s16, 0
      %p58 = por %p56, %p57
      %p59 = scmp.ne.s32.totalorder %s47, %s48
      %p60 = scmp.eq.s32.totalorder %s17, 1
      %p61 = por %p59, %p60
      %p63 = scmp.ne.s32.totalorder %s48, %s62
      %p64 = scmp.eq.s32.totalorder %s17, 0
      %p65 = por %p63, %p64
      %s67 = sadd.s32 %s66, 1
      %p70 = scmp.eq.s32.totalorder %s11, 1
      %p71 = scmp.ne.s32.totalorder %s66, %s68
      %p72 = scmp.eq.s32.totalorder %s11, 0
      %p73 = por %p71, %p72
      %p74 = scmp.ne.s32.totalorder %s66, %s68
      %p75 = scmp.eq.s32.totalorder %s16, 1
      %p76 = por %p74, %p75
      %p77 = scmp.ne.s32.totalorder %s68, %s69
      %p78 = scmp.eq.s32.totalorder %s16, 0
      %p79 = por %p77, %p78
      %p80 = scmp.ne.s32.totalorder %s68, %s69
      %p81 = scmp.eq.s32.totalorder %s17, 1
      %p82 = por %p80, %p81
      %p84 = scmp.ne.s32.totalorder %s69, %s83
      %p85 = scmp.eq.s32.totalorder %s17, 0
      %p86 = por %p84, %p85
      %s88 = sadd.s32 %s87, 1
      %p91 = scmp.eq.s32.totalorder %s11, 1
      %p92 = scmp.ne.s32.totalorder %s87, %s89
      %p93 = scmp.eq.s32.totalorder %s11, 0
      %p94 = por %p92, %p93
      %p95 = scmp.ne.s32.totalorder %s87, %s89
      %p96 = scmp.eq.s32.totalorder %s16, 1
      %p97 = por %p95, %p96
      %p98 = scmp.ne.s32.totalorder %s89, %s90
      %p99 = scmp.eq.s32.totalorder %s16, 0
      %p100 = por %p98, %p99
      %p101 = scmp.ne.s32.totalorder %s89, %s90
      %p102 = scmp.eq.s32.totalorder %s17, 1
      %p103 = por %p101, %p102
      %p105 = scmp.ne.s32.totalorder %s90, %s104
      %p106 = scmp.eq.s32.totalorder %s17, 0
      %p107 = por %p105, %p106
      %s108 = ssub.s32 %s11, %s18
      %p109 = scmp.eq.s32.totalorder %s108, 0
      %s111 = sadd.s32 %s110, 1
      %s112 = scalar_select %p109, %s110, %s111
      %p115 = pneg %p109
      %p116 = scmp.eq.s32.totalorder %s11, 1
      %p117 = por %p115, %p116
      %p118 = scmp.ne.s32.totalorder %s110, %s113
      %p119 = scmp.eq.s32.totalorder %s11, 0
      %p120 = por %p118, %p119
      %p121 = scmp.ne.s32.totalorder %s110, %s113
      %p122 = scmp.eq.s32.totalorder %s16, 1
      %p123 = por %p121, %p122
      %p124 = scmp.ne.s32.totalorder %s113, %s114
      %p125 = scmp.eq.s32.totalorder %s16, 0
      %p126 = por %p124, %p125
      %p127 = scmp.ne.s32.totalorder %s113, %s114
      %p128 = scmp.eq.s32.totalorder %s17, 1
      %p129 = por %p127, %p128
      %p131 = scmp.ne.s32.totalorder %s114, %s130
      %p132 = scmp.eq.s32.totalorder %s17, 0
      %p133 = por %p131, %p132
      %p134 = scmp.le.s32.totalorder 1, %s11
      %p135 = scmp.lt.s32.totalorder %s11, 3
      %p136 = pnand %p134, %p135
      %p137 = pneg %p136
      // Predicated region
      $region9: #{decoder_forward.1} parent=5 // pred_check
        _
      $region10: #{decoder_forward.1} parent=5 // pred_check_branch
        %139 = sbr.rel (%p136) target = $region12
      $region11: #{decoder_forward.1} parent=5 // pred_region
        %s140 = ssub.s32 %s11, 1
        // Predicated region
        $region13: #{decoder_forward.1} parent=11 // pred_check
          %p141 = pneg %p58
        $region14: #{decoder_forward.1} parent=11 // pred_check_branch
          %143 = sbr.rel (%p141) target = $region16
        $region15: #{decoder_forward.1} parent=11 // pred_region
          _
        $region16: #{decoder_forward.1} parent=11 // pred_fallthru
          _
        // Predicated region
        $region17: #{decoder_forward.1} parent=11 // pred_check
          %p144 = pneg %p79
        $region18: #{decoder_forward.1} parent=11 // pred_check_branch
          %146 = sbr.rel (%p144) target = $region20
        $region19: #{decoder_forward.1} parent=11 // pred_region
          _
        $region20: #{decoder_forward.1} parent=11 // pred_fallthru
          _
        // Predicated region
        $region21: #{decoder_forward.1} parent=11 // pred_check
          %p147 = pneg %p100
        $region22: #{decoder_forward.1} parent=11 // pred_check_branch
          %149 = sbr.rel (%p147) target = $region24
        $region23: #{decoder_forward.1} parent=11 // pred_region
          %s151 = ssub.s32 8704, 8704
          %152 = vsyncadd [#allocation5], %s151
          %s153 = sshll.u32 [#allocation4], 4
          %s154 = int_to_ptr.vmem [resolvable:$true] %s153
          %159 = dma.hbm_to_vmem [thread:$0]  %s3, 8704, %s154, [#allocation5], 256, 256, 16
        $region24: #{decoder_forward.1} parent=11 // pred_fallthru
          _
      $region12: #{decoder_forward.1} parent=5 // pred_fallthru
        _
      %p160 = scmp.lt.s32.totalorder %s11, 2
      // Predicated region
      $region25: #{decoder_forward.1} parent=5 // pred_check
        %p161 = pneg %p160
      $region26: #{decoder_forward.1} parent=5 // pred_check_branch
        %163 = sbr.rel (%p161) target = $region28
      $region27: #{decoder_forward.1} parent=5 // pred_region
        // Predicated region
        $region29: #{decoder_forward.1} parent=27 // pred_check
          %p164 = pneg %p31
        $region30: #{decoder_forward.1} parent=27 // pred_check_branch
          %166 = sbr.rel (%p164) target = $region32
        $region31: #{decoder_forward.1} parent=27 // pred_region
          %s167 = sand.u32 %s21, 1
          %s168 = sand.u32 %s21, 1
          %s169 = smul.addr %s168, 32
          %s170 = scalar_lea.vmem [#allocation3], %s169
          %s171 = smul.u32 2, %s11
          %s172 = smul.addr %s171, 8
          %s173 = scalar_lea.vmem %s0, %s172
          // Predicated region
          $region33: #{decoder_forward.1} parent=31 // pred_check
            _
          $region34: #{decoder_forward.1} parent=31 // pred_check_branch
            %175 = sbr.rel (0) target = $region36
          $region35: #{decoder_forward.1} parent=31 // pred_region
            // Predicated region
            $region37: #{decoder_forward.1} parent=35 // pred_check
              _
            $region38: #{decoder_forward.1} parent=35 // pred_check_branch
              %177 = sbr.rel (0) target = $region40
            $region39: #{decoder_forward.1} parent=35 // pred_region
              loop: start=0, step=1, limit=1
              $region41: #{decoder_forward.1} parent=39 // loop_pre_header
                _
              $region42: #{decoder_forward.1} parent=39 // loop_header
                %s179 = sphi 0, %s183
                %p180 = scmp.ge.s32.totalorder %s179, 1
                %s184 = sphi %s173, %s173
                %s185 = sphi %s170, %s170
              $region43: #{decoder_forward.1} parent=39 // loop_header_branch
                %182 = sbr.rel (%p180) target = $region47
              $region44: #{decoder_forward.1} parent=39 // loop_body
                %v186 = vld [vmem:[%s184] sm:$0xff]
                %187 = vst [vmem:[%s185] sm:$0xff] %v186
                %v188 = vld [vmem:[%s184 + $0x8] sm:$0xff]
                %189 = vst [vmem:[%s185 + $0x8] sm:$0xff] %v188
                %v190 = vld [vmem:[%s184 + $0x20] sm:$0xff]
                %191 = vst [vmem:[%s185 + $0x10] sm:$0xff] %v190
                %v192 = vld [vmem:[%s184 + $0x28] sm:$0xff]
                %193 = vst [vmem:[%s185 + $0x18] sm:$0xff] %v192
              $region45: #{decoder_forward.1} parent=39 // loop_footer
                %s183 = sadd.s32 1, %s179
              $region46: #{decoder_forward.1} parent=39 // loop_footer_branch
                %178 = sbr.rel target = $region42
              $region47: #{decoder_forward.1} parent=39 // loop_exit
                _
            $region40: #{decoder_forward.1} parent=35 // pred_fallthru
              _
            // Predicated region
            $region48: #{decoder_forward.1} parent=35 // pred_check
              _
            $region49: #{decoder_forward.1} parent=35 // pred_check_branch
              %195 = sbr.rel target = $region51
            $region50: #{decoder_forward.1} parent=35 // pred_region
              _
            $region51: #{decoder_forward.1} parent=35 // pred_fallthru
              _
          $region36: #{decoder_forward.1} parent=31 // pred_fallthru
            _
          %196 = vnop
        $region32: #{decoder_forward.1} parent=27 // pred_fallthru
          _
      $region28: #{decoder_forward.1} parent=5 // pred_fallthru
        _
      %p197 = scmp.le.s32.totalorder 1, %s11
      %p198 = scmp.lt.s32.totalorder %s11, 3
      %p199 = pnand %p197, %p198
      %p200 = pneg %p199
      // Predicated region
      $region52: #{decoder_forward.1} parent=5 // pred_check
        _
      $region53: #{decoder_forward.1} parent=5 // pred_check_branch
        %202 = sbr.rel (%p199) target = $region55
      $region54: #{decoder_forward.1} parent=5 // pred_region
        %s203 = ssub.s32 %s11, 1
        %s204 = sand.u32 %s24, 1
        %s205 = sand.u32 %s24, 1
        %s206 = smul.addr %s205, 32
        %s207 = scalar_lea.vmem [#allocation3], %s206
        // Predicated region
        $region56: #{decoder_forward.1} parent=54 // pred_check
          %p208 = pneg %p37
        $region57: #{decoder_forward.1} parent=54 // pred_check_branch
          %210 = sbr.rel (%p208) target = $region59
        $region58: #{decoder_forward.1} parent=54 // pred_region
          _
        $region59: #{decoder_forward.1} parent=54 // pred_fallthru
          _
        // Predicated region
        $region60: #{decoder_forward.1} parent=54 // pred_check
          %p211 = pneg %p100
        $region61: #{decoder_forward.1} parent=54 // pred_check_branch
          %213 = sbr.rel (%p211) target = $region63
        $region62: #{decoder_forward.1} parent=54 // pred_region
          %214 = dma.done [#allocation5], 8704
        $region63: #{decoder_forward.1} parent=54 // pred_fallthru
          _
        %s215 = sand.u32 %s24, 1
        %s216 = sand.u32 %s24, 1
        %s217 = smul.addr %s216, 32
        %s218 = scalar_lea.vmem [#allocation3], %s217
        %p219 = pneg %p37
        %p220 = pneg %p34
        %p221 = pneg %p58
        %p222 = pneg %p55
        %p223 = pneg %p79
        %p224 = pneg %p76
        %p225 = pneg %p100
        %p226 = pneg %p97
        %p227 = pneg %p126
        %p228 = pneg %p123
        %s229 = sand.u32 %s113, 1
        %s230 = sand.u32 %s113, 1
        %s231 = smul.addr %s230, 32
        %s232 = scalar_lea.vmem [#allocation6], %s231
        %s233 = smul.u32 2, %s16
        %s234 = smul.u32 2, %s16
        %v235 = vld [vmem:[%s1] sm:$0xff]
        %v236 = vld [vmem:[%s1 + $0x8] sm:$0xff]
        %v237 = vld [vmem:[%s207] sm:$0xff]
        %v238 = vld [vmem:[%s207 + $0x8] sm:$0xff]
        %v239 = vld [vmem:[%s207 + $0x10] sm:$0xff]
        %v240 = vld [vmem:[%s207 + $0x18] sm:$0xff]
        %vm241 = vcmask 130048
        %v243 = vsel %vm241, %v235, 0
        %v246 = vsel %vm241, %v236, 0
        %248 = vmatprep.subr.mxu0 %v238
        %249 = vmatpush1.msra.mxu0 %v237
        %250 = vmatprep.subr.mxu0 %v240
        %251 = vmatpush1.msra.mxu0 %v239
        %252 = vmatprep.subr.mxu0 0.0
        %253 = vmatpush1.msra.mxu0 0.0
        %254 = vmatprep.subr.mxu0 0.0
        %255 = vmatpush1.msra.mxu0 0.0
        %256 = vmatprep.subr.mxu0 0.0
        %257 = vmatpush1.msra.mxu0 0.0
        %258 = vmatprep.subr.mxu0 0.0
        %259 = vmatpush1.msra.mxu0 0.0
        %260 = vmatprep.subr.mxu0 0.0
        %261 = vmatpush1.msra.mxu0 0.0
        %262 = vmatprep.subr.mxu0 0.0
        %263 = vmatpush1.msra.mxu0 0.0
        %264 = vmatprep.subr.mxu0 0.0
        %265 = vmatpush1.msra.mxu0 0.0
        %266 = vmatprep.subr.mxu0 0.0
        %267 = vmatpush1.msra.mxu0 0.0
        %268 = vmatprep.subr.mxu0 0.0
        %269 = vmatpush1.msra.mxu0 0.0
        %270 = vmatprep.subr.mxu0 0.0
        %271 = vmatpush1.msra.mxu0 0.0
        %272 = vmatprep.subr.mxu0 0.0
        %273 = vmatpush1.msra.mxu0 0.0
        %274 = vmatprep.subr.mxu0 0.0
        %275 = vmatpush1.msra.mxu0 0.0
        %276 = vmatprep.subr.mxu0 0.0
        %277 = vmatpush1.msra.mxu0 0.0
        %278 = vmatprep.subr.mxu0 0.0
        %279 = vmatpush1.msra.mxu0 0.0
        %280 = vmatprep.subr.mxu0 0.0
        %281 = vmatpush1.msra.mxu0 0.0
        %282 = vmatprep.subr.mxu0 0.0
        %283 = vmatpush1.msra.mxu0 0.0
        %284 = vmatprep.subr.mxu0 0.0
        %285 = vmatpush1.msra.mxu0 0.0
        %286 = vmatprep.subr.mxu0 0.0
        %287 = vmatpush1.msra.mxu0 0.0
        %288 = vmatprep.subr.mxu0 0.0
        %289 = vmatpush1.msra.mxu0 0.0
        %290 = vmatprep.subr.mxu0 0.0
        %291 = vmatpush1.msra.mxu0 0.0
        %292 = vmatprep.subr.mxu0 0.0
        %293 = vmatpush1.msra.mxu0 0.0
        %294 = vmatprep.subr.mxu0 0.0
        %295 = vmatpush1.msra.mxu0 0.0
        %296 = vmatprep.subr.mxu0 0.0
        %297 = vmatpush1.msra.mxu0 0.0
        %298 = vmatprep.subr.mxu0 0.0
        %299 = vmatpush1.msra.mxu0 0.0
        %300 = vmatprep.subr.mxu0 0.0
        %301 = vmatpush1.msra.mxu0 0.0
        %302 = vmatprep.subr.mxu0 0.0
        %303 = vmatpush1.msra.mxu0 0.0
        %304 = vmatprep.subr.mxu0 0.0
        %305 = vmatpush1.msra.mxu0 0.0
        %306 = vmatprep.subr.mxu0 0.0
        %307 = vmatpush1.msra.mxu0 0.0
        %308 = vmatprep.subr.mxu0 0.0
        %309 = vmatpush1.msra.mxu0 0.0
        %310 = vmatprep.subr.mxu0 0.0
        %311 = vmatpush1.msra.mxu0 0.0
        %312 = vmatprep.mubr.f32.mxu0 0.0
        %313 = vmatmul.mubr.f32.gmra.mrb[0].mxu0 %v243
        %v314 = vpop.f32.mrb[0].mxu0
        %v315 = vadd.f32 0.0, %v314
        %v316 = vpop.f32.mrb[0].mxu0
        %v317 = vadd.f32 0.0, %v316
        %318 = vmatprep.mubr.f32.mxu0 0.0
        %319 = vmatmul.mubr.f32.gmra.mrb[0].mxu0 %v246
        %v320 = vpop.f32.mrb[0].mxu0
        %v321 = vadd.f32 0.0, %v320
        %v322 = vpop.f32.mrb[0].mxu0
        %v323 = vadd.f32 0.0, %v322
        %324 = vdwg.mxu0
        %v325 = vtanh.pop %v315
        %v326 = vtanh.pop %v317
        %v327 = vtanh.pop %v321
        %v328 = vtanh.pop %v323
        %329 = vrot.lane.b32.xlu0 %v325, 17
        %v330 = vpop.permute.xlu0 %329
        %331 = vrot.lane.b32.xlu0 %v326, 17
        %v332 = vpop.permute.xlu0 %331
        %v333 = vlaneseq
        %v334 = vand.u32 %v333, 127
        %vm335 = vcmp.lt.s32.totalorder %v334, 17
        %v336 = vsel %vm335, %v330, %v332
        %v337 = vsel %vm335, %v332, %v330
        %v338 = vld [vmem:[#allocation4] sm:$0xff]
        %v339 = vld [vmem:[#allocation4 + $0x8] sm:$0xff]
        %v340 = vmul.f32 %v337, %v338
        %v341 = vmul.f32 %v336, %v339
        %342 = vst [vmem:[#allocation2] sm:$0xff] %v340
        %343 = vst [vmem:[#allocation2 + $0x8] sm:$0xff] %v341
        %344 = vrot.lane.b32.xlu0 %v325, 16
        %v345 = vpop.permute.xlu0 %344
        %346 = vrot.lane.b32.xlu0 %v326, 16
        %v347 = vpop.permute.xlu0 %346
        %vm348 = vcmp.lt.s32.totalorder %v334, 16
        %v349 = vsel %vm348, %v345, %v347
        %v350 = vsel %vm348, %v347, %v345
        %v351 = vld [vmem:[#allocation4 + $0x10] sm:$0xff]
        %v352 = vld [vmem:[#allocation4 + $0x18] sm:$0xff]
        %v353 = vmul.f32 %v350, %v351
        %v354 = vmul.f32 %v349, %v352
        %355 = vst [vmem:[#allocation2 + $0x10] sm:$0xff] %v353
        %356 = vst [vmem:[#allocation2 + $0x18] sm:$0xff] %v354
        %357 = vrot.lane.b32.xlu0 %v325, 15
        %v358 = vpop.permute.xlu0 %357
        %359 = vrot.lane.b32.xlu0 %v326, 15
        %v360 = vpop.permute.xlu0 %359
        %vm361 = vcmp.lt.s32.totalorder %v334, 15
        %v362 = vsel %vm361, %v358, %v360
        %v363 = vsel %vm361, %v360, %v358
        %v364 = vld [vmem:[#allocation4 + $0x20] sm:$0xff]
        %v365 = vld [vmem:[#allocation4 + $0x28] sm:$0xff]
        %v366 = vmul.f32 %v363, %v364
        %v367 = vmul.f32 %v362, %v365
        %368 = vst [vmem:[#allocation2 + $0x20] sm:$0xff] %v366
        %369 = vst [vmem:[#allocation2 + $0x28] sm:$0xff] %v367
        %370 = vrot.lane.b32.xlu0 %v325, 1
        %v371 = vpop.permute.xlu0 %370
        %372 = vrot.lane.b32.xlu0 %v326, 1
        %v373 = vpop.permute.xlu0 %372
        %vm374 = vcmp.lt.s32.totalorder %v334, 1
        %v375 = vsel %vm374, %v371, %v373
        %v376 = vsel %vm374, %v373, %v371
        %v377 = vld [vmem:[#allocation4 + $0x30] sm:$0xff]
        %v378 = vld [vmem:[#allocation4 + $0x38] sm:$0xff]
        %v379 = vmul.f32 %v376, %v377
        %v380 = vmul.f32 %v375, %v378
        %381 = vst [vmem:[#allocation2 + $0x30] sm:$0xff] %v379
        %382 = vst [vmem:[#allocation2 + $0x38] sm:$0xff] %v380
        %v383 = vld [vmem:[#allocation4 + $0x40] sm:$0xff]
        %v384 = vld [vmem:[#allocation4 + $0x48] sm:$0xff]
        %v385 = vmul.f32 %v325, %v383
        %v386 = vmul.f32 %v326, %v384
        %387 = vst [vmem:[#allocation2 + $0x40] sm:$0xff] %v385
        %388 = vst [vmem:[#allocation2 + $0x48] sm:$0xff] %v386
        %389 = vrot.lane.b32.xlu0 %v325, 127
        %v390 = vpop.permute.xlu0 %389
        %391 = vrot.lane.b32.xlu0 %v326, 127
        %v392 = vpop.permute.xlu0 %391
        %vm393 = vcmp.lt.s32.totalorder %v334, 127
        %v394 = vsel %vm393, %v390, %v392
        %v395 = vsel %vm393, %v392, %v390
        %v396 = vld [vmem:[#allocation4 + $0x50] sm:$0xff]
        %v397 = vld [vmem:[#allocation4 + $0x58] sm:$0xff]
        %v398 = vmul.f32 %v394, %v396
        %v399 = vmul.f32 %v395, %v397
        %400 = vst [vmem:[#allocation2 + $0x50] sm:$0xff] %v398
        %401 = vst [vmem:[#allocation2 + $0x58] sm:$0xff] %v399
        %402 = vrot.lane.b32.xlu0 %v325, 113
        %v403 = vpop.permute.xlu0 %402
        %404 = vrot.lane.b32.xlu0 %v326, 113
        %v405 = vpop.permute.xlu0 %404
        %vm406 = vcmp.lt.s32.totalorder %v334, 113
        %v407 = vsel %vm406, %v403, %v405
        %v408 = vsel %vm406, %v405, %v403
        %v409 = vld [vmem:[#allocation4 + $0x60] sm:$0xff]
        %v410 = vld [vmem:[#allocation4 + $0x68] sm:$0xff]
        %v411 = vmul.f32 %v407, %v409
        %v412 = vmul.f32 %v408, %v410
        %413 = vst [vmem:[#allocation2 + $0x60] sm:$0xff] %v411
        %414 = vst [vmem:[#allocation2 + $0x68] sm:$0xff] %v412
        %415 = vrot.lane.b32.xlu0 %v325, 112
        %v416 = vpop.permute.xlu0 %415
        %417 = vrot.lane.b32.xlu0 %v326, 112
        %v418 = vpop.permute.xlu0 %417
        %vm419 = vcmp.lt.s32.totalorder %v334, 112
        %v420 = vsel %vm419, %v416, %v418
        %v421 = vsel %vm419, %v418, %v416
        %v422 = vld [vmem:[#allocation4 + $0x70] sm:$0xff]
        %v423 = vld [vmem:[#allocation4 + $0x78] sm:$0xff]
        %v424 = vmul.f32 %v420, %v422
        %v425 = vmul.f32 %v421, %v423
        %426 = vst [vmem:[#allocation2 + $0x70] sm:$0xff] %v424
        %427 = vst [vmem:[#allocation2 + $0x78] sm:$0xff] %v425
        %428 = vrot.lane.b32.xlu0 %v325, 111
        %v429 = vpop.permute.xlu0 %428
        %430 = vrot.lane.b32.xlu0 %v326, 111
        %v431 = vpop.permute.xlu0 %430
        %vm432 = vcmp.lt.s32.totalorder %v334, 111
        %v433 = vsel %vm432, %v429, %v431
        %v434 = vsel %vm432, %v431, %v429
        %v435 = vld [vmem:[#allocation4 + $0x80] sm:$0xff]
        %v436 = vld [vmem:[#allocation4 + $0x88] sm:$0xff]
        %v437 = vmul.f32 %v433, %v435
        %v438 = vmul.f32 %v434, %v436
        %439 = vst [vmem:[#allocation2 + $0x80] sm:$0xff] %v437
        %440 = vst [vmem:[#allocation2 + $0x88] sm:$0xff] %v438
        %441 = vrot.lane.b32.xlu0 %v327, 34
        %v442 = vpop.permute.xlu0 %441
        %443 = vrot.lane.b32.xlu0 %v328, 34
        %v444 = vpop.permute.xlu0 %443
        %vm445 = vcmp.lt.s32.totalorder %v334, 34
        %v446 = vsel %vm445, %v442, %v444
        %v447 = vsel %vm445, %v444, %v442
        %v448 = vld [vmem:[#allocation4 + $0x90] sm:$0xff]
        %v449 = vld [vmem:[#allocation4 + $0x98] sm:$0xff]
        %v450 = vmul.f32 %v447, %v448
        %v451 = vmul.f32 %v446, %v449
        %452 = vst [vmem:[#allocation2 + $0x90] sm:$0xff] %v450
        %453 = vst [vmem:[#allocation2 + $0x98] sm:$0xff] %v451
        %454 = vrot.lane.b32.xlu0 %v327, 33
        %v455 = vpop.permute.xlu0 %454
        %456 = vrot.lane.b32.xlu0 %v328, 33
        %v457 = vpop.permute.xlu0 %456
        %vm458 = vcmp.lt.s32.totalorder %v334, 33
        %v459 = vsel %vm458, %v455, %v457
        %v460 = vsel %vm458, %v457, %v455
        %v461 = vld [vmem:[#allocation4 + $0xa0] sm:$0xff]
        %v462 = vld [vmem:[#allocation4 + $0xa8] sm:$0xff]
        %v463 = vmul.f32 %v460, %v461
        %v464 = vmul.f32 %v459, %v462
        %465 = vst [vmem:[#allocation2 + $0xa0] sm:$0xff] %v463
        %466 = vst [vmem:[#allocation2 + $0xa8] sm:$0xff] %v464
        %467 = vrot.lane.b32.xlu0 %v327, 32
        %v468 = vpop.permute.xlu0 %467
        %469 = vrot.lane.b32.xlu0 %v328, 32
        %v470 = vpop.permute.xlu0 %469
        %vm471 = vcmp.lt.s32.totalorder %v334, 32
        %v472 = vsel %vm471, %v468, %v470
        %v473 = vsel %vm471, %v470, %v468
        %v474 = vld [vmem:[#allocation4 + $0xb0] sm:$0xff]
        %v475 = vld [vmem:[#allocation4 + $0xb8] sm:$0xff]
        %v476 = vmul.f32 %v473, %v474
        %v477 = vmul.f32 %v472, %v475
        %478 = vst [vmem:[#allocation2 + $0xb0] sm:$0xff] %v476
        %479 = vst [vmem:[#allocation2 + $0xb8] sm:$0xff] %v477
        %480 = vrot.lane.b32.xlu0 %v327, 31
        %v481 = vpop.permute.xlu0 %480
        %482 = vrot.lane.b32.xlu0 %v328, 31
        %v483 = vpop.permute.xlu0 %482
        %vm484 = vcmp.lt.s32.totalorder %v334, 31
        %v485 = vsel %vm484, %v481, %v483
        %v486 = vsel %vm484, %v483, %v481
        %v487 = vld [vmem:[#allocation4 + $0xc0] sm:$0xff]
        %v488 = vld [vmem:[#allocation4 + $0xc8] sm:$0xff]
        %v489 = vmul.f32 %v486, %v487
        %v490 = vmul.f32 %v485, %v488
        %491 = vst [vmem:[#allocation2 + $0xc0] sm:$0xff] %v489
        %492 = vst [vmem:[#allocation2 + $0xc8] sm:$0xff] %v490
        %493 = vrot.lane.b32.xlu0 %v327, 30
        %v494 = vpop.permute.xlu0 %493
        %495 = vrot.lane.b32.xlu0 %v328, 30
        %v496 = vpop.permute.xlu0 %495
        %vm497 = vcmp.lt.s32.totalorder %v334, 30
        %v498 = vsel %vm497, %v494, %v496
        %v499 = vsel %vm497, %v496, %v494
        %v500 = vld [vmem:[#allocation4 + $0xd0] sm:$0xff]
        %v501 = vld [vmem:[#allocation4 + $0xd8] sm:$0xff]
        %v502 = vmul.f32 %v499, %v500
        %v503 = vmul.f32 %v498, %v501
        %504 = vst [vmem:[#allocation2 + $0xd0] sm:$0xff] %v502
        %505 = vst [vmem:[#allocation2 + $0xd8] sm:$0xff] %v503
        %506 = vrot.lane.b32.xlu0 %v327, 18
        %v507 = vpop.permute.xlu0 %506
        %508 = vrot.lane.b32.xlu0 %v328, 18
        %v509 = vpop.permute.xlu0 %508
        %vm510 = vcmp.lt.s32.totalorder %v334, 18
        %v511 = vsel %vm510, %v507, %v509
        %v512 = vsel %vm510, %v509, %v507
        %v513 = vld [vmem:[#allocation4 + $0xe0] sm:$0xff]
        %v514 = vld [vmem:[#allocation4 + $0xe8] sm:$0xff]
        %v515 = vmul.f32 %v512, %v513
        %v516 = vmul.f32 %v511, %v514
        %517 = vst [vmem:[#allocation2 + $0xe0] sm:$0xff] %v515
        %518 = vst [vmem:[#allocation2 + $0xe8] sm:$0xff] %v516
        %519 = vrot.lane.b32.xlu0 %v327, 17
        %v520 = vpop.permute.xlu0 %519
        %521 = vrot.lane.b32.xlu0 %v328, 17
        %v522 = vpop.permute.xlu0 %521
        %v523 = vsel %vm335, %v520, %v522
        %v524 = vsel %vm335, %v522, %v520
        %v525 = vld [vmem:[#allocation4 + $0xf0] sm:$0xff]
        %v526 = vld [vmem:[#allocation4 + $0xf8] sm:$0xff]
        %v527 = vmul.f32 %v524, %v525
        %v528 = vmul.f32 %v523, %v526
        %529 = vst [vmem:[#allocation2 + $0xf0] sm:$0xff] %v527
        %530 = vst [vmem:[#allocation2 + $0xf8] sm:$0xff] %v528
        %531 = vrot.lane.b32.xlu0 %v327, 16
        %v532 = vpop.permute.xlu0 %531
        %533 = vrot.lane.b32.xlu0 %v328, 16
        %v534 = vpop.permute.xlu0 %533
        %v535 = vsel %vm348, %v532, %v534
        %v536 = vsel %vm348, %v534, %v532
        %v537 = vld [vmem:[#allocation4 + $0x100] sm:$0xff]
        %v538 = vld [vmem:[#allocation4 + $0x108] sm:$0xff]
        %v539 = vmul.f32 %v536, %v537
        %v540 = vmul.f32 %v535, %v538
        %541 = vst [vmem:[#allocation2 + $0x100] sm:$0xff] %v539
        %542 = vst [vmem:[#allocation2 + $0x108] sm:$0xff] %v540
        %543 = vrot.lane.b32.xlu0 %v327, 15
        %v544 = vpop.permute.xlu0 %543
        %545 = vrot.lane.b32.xlu0 %v328, 15
        %v546 = vpop.permute.xlu0 %545
        %v547 = vsel %vm361, %v544, %v546
        %v548 = vsel %vm361, %v546, %v544
        %v549 = vld [vmem:[#allocation4 + $0x110] sm:$0xff]
        %v550 = vld [vmem:[#allocation4 + $0x118] sm:$0xff]
        %v551 = vmul.f32 %v548, %v549
        %v552 = vmul.f32 %v547, %v550
        %553 = vst [vmem:[#allocation2 + $0x110] sm:$0xff] %v551
        %554 = vst [vmem:[#allocation2 + $0x118] sm:$0xff] %v552
        %555 = vrot.lane.b32.xlu0 %v327, 14
        %v556 = vpop.permute.xlu0 %555
        %557 = vrot.lane.b32.xlu0 %v328, 14
        %v558 = vpop.permute.xlu0 %557
        %vm559 = vcmp.lt.s32.totalorder %v334, 14
        %v560 = vsel %vm559, %v556, %v558
        %v561 = vsel %vm559, %v558, %v556
        %v562 = vld [vmem:[#allocation4 + $0x120] sm:$0xff]
        %v563 = vld [vmem:[#allocation4 + $0x128] sm:$0xff]
        %v564 = vmul.f32 %v561, %v562
        %v565 = vmul.f32 %v560, %v563
        %566 = vst [vmem:[#allocation2 + $0x120] sm:$0xff] %v564
        %567 = vst [vmem:[#allocation2 + $0x128] sm:$0xff] %v565
        %568 = vrot.lane.b32.xlu0 %v327, 2
        %v569 = vpop.permute.xlu0 %568
        %570 = vrot.lane.b32.xlu0 %v328, 2
        %v571 = vpop.permute.xlu0 %570
        %vm572 = vcmp.lt.s32.totalorder %v334, 2
        %v573 = vsel %vm572, %v569, %v571
        %v574 = vsel %vm572, %v571, %v569
        %v575 = vld [vmem:[#allocation4 + $0x130] sm:$0xff]
        %v576 = vld [vmem:[#allocation4 + $0x138] sm:$0xff]
        %v577 = vmul.f32 %v574, %v575
        %v578 = vmul.f32 %v573, %v576
        %579 = vst [vmem:[#allocation2 + $0x130] sm:$0xff] %v577
        %580 = vst [vmem:[#allocation2 + $0x138] sm:$0xff] %v578
        %581 = vrot.lane.b32.xlu0 %v327, 1
        %v582 = vpop.permute.xlu0 %581
        %583 = vrot.lane.b32.xlu0 %v328, 1
        %v584 = vpop.permute.xlu0 %583
        %v585 = vsel %vm374, %v582, %v584
        %v586 = vsel %vm374, %v584, %v582
        %v587 = vld [vmem:[#allocation4 + $0x140] sm:$0xff]
        %v588 = vld [vmem:[#allocation4 + $0x148] sm:$0xff]
        %v589 = vmul.f32 %v586, %v587
        %v590 = vmul.f32 %v585, %v588
        %591 = vst [vmem:[#allocation2 + $0x140] sm:$0xff] %v589
        %592 = vst [vmem:[#allocation2 + $0x148] sm:$0xff] %v590
        %v593 = vld [vmem:[#allocation4 + $0x150] sm:$0xff]
        %v594 = vld [vmem:[#allocation4 + $0x158] sm:$0xff]
        %v595 = vmul.f32 %v327, %v593
        %v596 = vmul.f32 %v328, %v594
        %597 = vst [vmem:[#allocation2 + $0x150] sm:$0xff] %v595
        %598 = vst [vmem:[#allocation2 + $0x158] sm:$0xff] %v596
        %599 = vrot.lane.b32.xlu0 %v327, 127
        %v600 = vpop.permute.xlu0 %599
        %601 = vrot.lane.b32.xlu0 %v328, 127
        %v602 = vpop.permute.xlu0 %601
        %v603 = vsel %vm393, %v600, %v602
        %v604 = vsel %vm393, %v602, %v600
        %v605 = vld [vmem:[#allocation4 + $0x160] sm:$0xff]
        %v606 = vld [vmem:[#allocation4 + $0x168] sm:$0xff]
        %v607 = vmul.f32 %v603, %v605
        %v608 = vmul.f32 %v604, %v606
        %609 = vst [vmem:[#allocation2 + $0x160] sm:$0xff] %v607
        %610 = vst [vmem:[#allocation2 + $0x168] sm:$0xff] %v608
        %611 = vrot.lane.b32.xlu0 %v327, 126
        %v612 = vpop.permute.xlu0 %611
        %613 = vrot.lane.b32.xlu0 %v328, 126
        %v614 = vpop.permute.xlu0 %613
        %vm615 = vcmp.lt.s32.totalorder %v334, 126
        %v616 = vsel %vm615, %v612, %v614
        %v617 = vsel %vm615, %v614, %v612
        %v618 = vld [vmem:[#allocation4 + $0x170] sm:$0xff]
        %v619 = vld [vmem:[#allocation4 + $0x178] sm:$0xff]
        %v620 = vmul.f32 %v616, %v618
        %v621 = vmul.f32 %v617, %v619
        %622 = vst [vmem:[#allocation2 + $0x170] sm:$0xff] %v620
        %623 = vst [vmem:[#allocation2 + $0x178] sm:$0xff] %v621
        %624 = vrot.lane.b32.xlu0 %v327, 114
        %v625 = vpop.permute.xlu0 %624
        %626 = vrot.lane.b32.xlu0 %v328, 114
        %v627 = vpop.permute.xlu0 %626
        %vm628 = vcmp.lt.s32.totalorder %v334, 114
        %v629 = vsel %vm628, %v625, %v627
        %v630 = vsel %vm628, %v627, %v625
        %v631 = vld [vmem:[#allocation4 + $0x180] sm:$0xff]
        %v632 = vld [vmem:[#allocation4 + $0x188] sm:$0xff]
        %v633 = vmul.f32 %v629, %v631
        %v634 = vmul.f32 %v630, %v632
        %635 = vst [vmem:[#allocation2 + $0x180] sm:$0xff] %v633
        %636 = vst [vmem:[#allocation2 + $0x188] sm:$0xff] %v634
        %637 = vrot.lane.b32.xlu0 %v327, 113
        %v638 = vpop.permute.xlu0 %637
        %639 = vrot.lane.b32.xlu0 %v328, 113
        %v640 = vpop.permute.xlu0 %639
        %v641 = vsel %vm406, %v638, %v640
        %v642 = vsel %vm406, %v640, %v638
        %v643 = vld [vmem:[#allocation4 + $0x190] sm:$0xff]
        %v644 = vld [vmem:[#allocation4 + $0x198] sm:$0xff]
        %v645 = vmul.f32 %v641, %v643
        %v646 = vmul.f32 %v642, %v644
        %647 = vst [vmem:[#allocation2 + $0x190] sm:$0xff] %v645
        %648 = vst [vmem:[#allocation2 + $0x198] sm:$0xff] %v646
        %649 = vrot.lane.b32.xlu0 %v327, 112
        %v650 = vpop.permute.xlu0 %649
        %651 = vrot.lane.b32.xlu0 %v328, 112
        %v652 = vpop.permute.xlu0 %651
        %v653 = vsel %vm419, %v650, %v652
        %v654 = vsel %vm419, %v652, %v650
        %v655 = vld [vmem:[#allocation4 + $0x1a0] sm:$0xff]
        %v656 = vld [vmem:[#allocation4 + $0x1a8] sm:$0xff]
        %v657 = vmul.f32 %v653, %v655
        %v658 = vmul.f32 %v654, %v656
        %659 = vst [vmem:[#allocation2 + $0x1a0] sm:$0xff] %v657
        %660 = vst [vmem:[#allocation2 + $0x1a8] sm:$0xff] %v658
        %661 = vrot.lane.b32.xlu0 %v327, 111
        %v662 = vpop.permute.xlu0 %661
        %663 = vrot.lane.b32.xlu0 %v328, 111
        %v664 = vpop.permute.xlu0 %663
        %v665 = vsel %vm432, %v662, %v664
        %v666 = vsel %vm432, %v664, %v662
        %v667 = vld [vmem:[#allocation4 + $0x1b0] sm:$0xff]
        %v668 = vld [vmem:[#allocation4 + $0x1b8] sm:$0xff]
        %v669 = vmul.f32 %v665, %v667
        %v670 = vmul.f32 %v666, %v668
        %671 = vst [vmem:[#allocation2 + $0x1b0] sm:$0xff] %v669
        %672 = vst [vmem:[#allocation2 + $0x1b8] sm:$0xff] %v670
        %673 = vrot.lane.b32.xlu0 %v327, 110
        %v674 = vpop.permute.xlu0 %673
        %675 = vrot.lane.b32.xlu0 %v328, 110
        %v676 = vpop.permute.xlu0 %675
        %vm677 = vcmp.lt.s32.totalorder %v334, 110
        %v678 = vsel %vm677, %v674, %v676
        %v679 = vsel %vm677, %v676, %v674
        %v680 = vld [vmem:[#allocation4 + $0x1c0] sm:$0xff]
        %v681 = vld [vmem:[#allocation4 + $0x1c8] sm:$0xff]
        %v682 = vmul.f32 %v678, %v680
        %v683 = vmul.f32 %v679, %v681
        %684 = vst [vmem:[#allocation2 + $0x1c0] sm:$0xff] %v682
        %685 = vst [vmem:[#allocation2 + $0x1c8] sm:$0xff] %v683
        %686 = vrot.lane.b32.xlu0 %v327, 98
        %v687 = vpop.permute.xlu0 %686
        %688 = vrot.lane.b32.xlu0 %v328, 98
        %v689 = vpop.permute.xlu0 %688
        %vm690 = vcmp.lt.s32.totalorder %v334, 98
        %v691 = vsel %vm690, %v687, %v689
        %v692 = vsel %vm690, %v689, %v687
        %v693 = vld [vmem:[#allocation4 + $0x1d0] sm:$0xff]
        %v694 = vld [vmem:[#allocation4 + $0x1d8] sm:$0xff]
        %v695 = vmul.f32 %v691, %v693
        %v696 = vmul.f32 %v692, %v694
        %697 = vst [vmem:[#allocation2 + $0x1d0] sm:$0xff] %v695
        %698 = vst [vmem:[#allocation2 + $0x1d8] sm:$0xff] %v696
        %699 = vrot.lane.b32.xlu0 %v327, 97
        %v700 = vpop.permute.xlu0 %699
        %701 = vrot.lane.b32.xlu0 %v328, 97
        %v702 = vpop.permute.xlu0 %701
        %vm703 = vcmp.lt.s32.totalorder %v334, 97
        %v704 = vsel %vm703, %v700, %v702
        %v705 = vsel %vm703, %v702, %v700
        %v706 = vld [vmem:[#allocation4 + $0x1e0] sm:$0xff]
        %v707 = vld [vmem:[#allocation4 + $0x1e8] sm:$0xff]
        %v708 = vmul.f32 %v704, %v706
        %v709 = vmul.f32 %v705, %v707
        %710 = vst [vmem:[#allocation2 + $0x1e0] sm:$0xff] %v708
        %711 = vst [vmem:[#allocation2 + $0x1e8] sm:$0xff] %v709
        %712 = vrot.lane.b32.xlu0 %v327, 96
        %v713 = vpop.permute.xlu0 %712
        %714 = vrot.lane.b32.xlu0 %v328, 96
        %v715 = vpop.permute.xlu0 %714
        %vm716 = vcmp.lt.s32.totalorder %v334, 96
        %v717 = vsel %vm716, %v713, %v715
        %v718 = vsel %vm716, %v715, %v713
        %v719 = vld [vmem:[#allocation4 + $0x1f0] sm:$0xff]
        %v720 = vld [vmem:[#allocation4 + $0x1f8] sm:$0xff]
        %v721 = vmul.f32 %v717, %v719
        %v722 = vmul.f32 %v718, %v720
        %723 = vst [vmem:[#allocation2 + $0x1f0] sm:$0xff] %v721
        %724 = vst [vmem:[#allocation2 + $0x1f8] sm:$0xff] %v722
        %725 = vrot.lane.b32.xlu0 %v327, 95
        %v726 = vpop.permute.xlu0 %725
        %727 = vrot.lane.b32.xlu0 %v328, 95
        %v728 = vpop.permute.xlu0 %727
        %vm729 = vcmp.lt.s32.totalorder %v334, 95
        %v730 = vsel %vm729, %v726, %v728
        %v731 = vsel %vm729, %v728, %v726
        %v732 = vld [vmem:[#allocation4 + $0x200] sm:$0xff]
        %v733 = vld [vmem:[#allocation4 + $0x208] sm:$0xff]
        %v734 = vmul.f32 %v730, %v732
        %v735 = vmul.f32 %v731, %v733
        %736 = vst [vmem:[#allocation2 + $0x200] sm:$0xff] %v734
        %737 = vst [vmem:[#allocation2 + $0x208] sm:$0xff] %v735
        %738 = vrot.lane.b32.xlu0 %v327, 94
        %v739 = vpop.permute.xlu0 %738
        %740 = vrot.lane.b32.xlu0 %v328, 94
        %v741 = vpop.permute.xlu0 %740
        %vm742 = vcmp.lt.s32.totalorder %v334, 94
        %v743 = vsel %vm742, %v739, %v741
        %v744 = vsel %vm742, %v741, %v739
        %v745 = vld [vmem:[#allocation4 + $0x210] sm:$0xff]
        %v746 = vld [vmem:[#allocation4 + $0x218] sm:$0xff]
        %v747 = vmul.f32 %v743, %v745
        %v748 = vmul.f32 %v744, %v746
        %749 = vst [vmem:[#allocation2 + $0x210] sm:$0xff] %v747
        %750 = vst [vmem:[#allocation2 + $0x218] sm:$0xff] %v748
        %751 = vst [vmem:[#allocation2 + $0x220] sm:$0xff] 1.0
        %752 = vst [vmem:[#allocation2 + $0x228] sm:$0xff] 1.0
        %v753 = vld [vmem:[%s2] sm:$0xff]
        %v754 = vld [vmem:[%s2 + $0x8] sm:$0xff]
        %v755 = vld [vmem:[%s2 + $0x10] sm:$0xff]
        %v756 = vld [vmem:[%s2 + $0x18] sm:$0xff]
        %v757 = vld [vmem:[%s2 + $0x20] sm:$0xff]
        %v758 = vld [vmem:[%s2 + $0x28] sm:$0xff]
        %v759 = vld [vmem:[#allocation2] sm:$0xff]
        %v760 = vld [vmem:[#allocation2 + $0x8] sm:$0xff]
        %v761 = vld [vmem:[#allocation2 + $0x10] sm:$0xff]
        %v762 = vld [vmem:[#allocation2 + $0x18] sm:$0xff]
        %v763 = vld [vmem:[#allocation2 + $0x20] sm:$0xff]
        %v764 = vld [vmem:[#allocation2 + $0x28] sm:$0xff]
        %v765 = vld [vmem:[#allocation2 + $0x30] sm:$0xff]
        %v766 = vld [vmem:[#allocation2 + $0x38] sm:$0xff]
        %v767 = vld [vmem:[#allocation2 + $0x40] sm:$0xff]
        %v768 = vld [vmem:[#allocation2 + $0x48] sm:$0xff]
        %v769 = vld [vmem:[#allocation2 + $0x50] sm:$0xff]
        %v770 = vld [vmem:[#allocation2 + $0x58] sm:$0xff]
        %v771 = vld [vmem:[#allocation2 + $0x60] sm:$0xff]
        %v772 = vld [vmem:[#allocation2 + $0x68] sm:$0xff]
        %v773 = vld [vmem:[#allocation2 + $0x70] sm:$0xff]
        %v774 = vld [vmem:[#allocation2 + $0x78] sm:$0xff]
        %v775 = vld [vmem:[#allocation2 + $0x80] sm:$0xff]
        %v776 = vld [vmem:[#allocation2 + $0x88] sm:$0xff]
        %v777 = vld [vmem:[#allocation2 + $0x90] sm:$0xff]
        %v778 = vld [vmem:[#allocation2 + $0x98] sm:$0xff]
        %v779 = vld [vmem:[#allocation2 + $0xa0] sm:$0xff]
        %v780 = vld [vmem:[#allocation2 + $0xa8] sm:$0xff]
        %v781 = vld [vmem:[#allocation2 + $0xb0] sm:$0xff]
        %v782 = vld [vmem:[#allocation2 + $0xb8] sm:$0xff]
        %v783 = vld [vmem:[#allocation2 + $0xc0] sm:$0xff]
        %v784 = vld [vmem:[#allocation2 + $0xc8] sm:$0xff]
        %v785 = vld [vmem:[#allocation2 + $0xd0] sm:$0xff]
        %v786 = vld [vmem:[#allocation2 + $0xd8] sm:$0xff]
        %v787 = vld [vmem:[#allocation2 + $0xe0] sm:$0xff]
        %v788 = vld [vmem:[#allocation2 + $0xe8] sm:$0xff]
        %v789 = vld [vmem:[#allocation2 + $0xf0] sm:$0xff]
        %v790 = vld [vmem:[#allocation2 + $0xf8] sm:$0xff]
        %v791 = vld [vmem:[#allocation2 + $0x100] sm:$0xff]
        %v792 = vld [vmem:[#allocation2 + $0x108] sm:$0xff]
        %v793 = vld [vmem:[#allocation2 + $0x110] sm:$0xff]
        %v794 = vld [vmem:[#allocation2 + $0x118] sm:$0xff]
        %v795 = vld [vmem:[#allocation2 + $0x120] sm:$0xff]
        %v796 = vld [vmem:[#allocation2 + $0x128] sm:$0xff]
        %v797 = vld [vmem:[#allocation2 + $0x130] sm:$0xff]
        %v798 = vld [vmem:[#allocation2 + $0x138] sm:$0xff]
        %v799 = vld [vmem:[#allocation2 + $0x140] sm:$0xff]
        %v800 = vld [vmem:[#allocation2 + $0x148] sm:$0xff]
        %v801 = vld [vmem:[#allocation2 + $0x150] sm:$0xff]
        %v802 = vld [vmem:[#allocation2 + $0x158] sm:$0xff]
        %v803 = vld [vmem:[#allocation2 + $0x160] sm:$0xff]
        %v804 = vld [vmem:[#allocation2 + $0x168] sm:$0xff]
        %v805 = vld [vmem:[#allocation2 + $0x170] sm:$0xff]
        %v806 = vld [vmem:[#allocation2 + $0x178] sm:$0xff]
        %v807 = vld [vmem:[#allocation2 + $0x180] sm:$0xff]
        %v808 = vld [vmem:[#allocation2 + $0x188] sm:$0xff]
        %v809 = vld [vmem:[#allocation2 + $0x190] sm:$0xff]
        %v810 = vld [vmem:[#allocation2 + $0x198] sm:$0xff]
        %v811 = vld [vmem:[#allocation2 + $0x1a0] sm:$0xff]
        %v812 = vld [vmem:[#allocation2 + $0x1a8] sm:$0xff]
        %v813 = vld [vmem:[#allocation2 + $0x1b0] sm:$0xff]
        %v814 = vld [vmem:[#allocation2 + $0x1b8] sm:$0xff]
        %v815 = vld [vmem:[#allocation2 + $0x1c0] sm:$0xff]
        %v816 = vld [vmem:[#allocation2 + $0x1c8] sm:$0xff]
        %v817 = vld [vmem:[#allocation2 + $0x1d0] sm:$0xff]
        %v818 = vld [vmem:[#allocation2 + $0x1d8] sm:$0xff]
        %v819 = vld [vmem:[#allocation2 + $0x1e0] sm:$0xff]
        %v820 = vld [vmem:[#allocation2 + $0x1e8] sm:$0xff]
        %v821 = vld [vmem:[#allocation2 + $0x1f0] sm:$0xff]
        %v822 = vld [vmem:[#allocation2 + $0x1f8] sm:$0xff]
        %v823 = vld [vmem:[#allocation2 + $0x200] sm:$0xff]
        %v824 = vld [vmem:[#allocation2 + $0x208] sm:$0xff]
        %v825 = vld [vmem:[#allocation2 + $0x210] sm:$0xff]
        %v826 = vld [vmem:[#allocation2 + $0x218] sm:$0xff]
        %v827 = vld [vmem:[#allocation2 + $0x220] sm:$0xff]
        %v828 = vld [vmem:[#allocation2 + $0x228] sm:$0xff]
        %vm829 = vcmask 195584
        %v831 = vsel %vm829, %v755, 0
        %v834 = vsel %vm829, %v758, 0
        %836 = vmatprep.subr.mxu0 %v760
        %837 = vmatpush1.msra.mxu0 %v759
        %838 = vmatprep.subr.mxu0 %v762
        %839 = vmatpush1.msra.mxu0 %v761
        %840 = vmatprep.subr.mxu0 %v764
        %841 = vmatpush1.msra.mxu0 %v763
        %842 = vmatprep.subr.mxu0 %v766
        %843 = vmatpush1.msra.mxu0 %v765
        %844 = vmatprep.subr.mxu0 %v768
        %845 = vmatpush1.msra.mxu0 %v767
        %846 = vmatprep.subr.mxu0 %v770
        %847 = vmatpush1.msra.mxu0 %v769
        %848 = vmatprep.subr.mxu0 %v772
        %849 = vmatpush1.msra.mxu0 %v771
        %850 = vmatprep.subr.mxu0 %v774
        %851 = vmatpush1.msra.mxu0 %v773
        %852 = vmatprep.subr.mxu0 %v776
        %853 = vmatpush1.msra.mxu0 %v775
        %854 = vmatprep.subr.mxu0 %v778
        %855 = vmatpush1.msra.mxu0 %v777
        %856 = vmatprep.subr.mxu0 %v780
        %857 = vmatpush1.msra.mxu0 %v779
        %858 = vmatprep.subr.mxu0 %v782
        %859 = vmatpush1.msra.mxu0 %v781
        %860 = vmatprep.subr.mxu0 %v784
        %861 = vmatpush1.msra.mxu0 %v783
        %862 = vmatprep.subr.mxu0 %v786
        %863 = vmatpush1.msra.mxu0 %v785
        %864 = vmatprep.subr.mxu0 %v788
        %865 = vmatpush1.msra.mxu0 %v787
        %866 = vmatprep.subr.mxu0 %v790
        %867 = vmatpush1.msra.mxu0 %v789
        %868 = vmatprep.subr.mxu0 %v792
        %869 = vmatpush1.msra.mxu0 %v791
        %870 = vmatprep.subr.mxu0 %v794
        %871 = vmatpush1.msra.mxu0 %v793
        %872 = vmatprep.subr.mxu0 %v796
        %873 = vmatpush1.msra.mxu0 %v795
        %874 = vmatprep.subr.mxu0 %v798
        %875 = vmatpush1.msra.mxu0 %v797
        %876 = vmatprep.subr.mxu0 %v800
        %877 = vmatpush1.msra.mxu0 %v799
        %878 = vmatprep.subr.mxu0 %v802
        %879 = vmatpush1.msra.mxu0 %v801
        %880 = vmatprep.subr.mxu0 %v804
        %881 = vmatpush1.msra.mxu0 %v803
        %882 = vmatprep.subr.mxu0 %v806
        %883 = vmatpush1.msra.mxu0 %v805
        %884 = vmatprep.subr.mxu0 %v808
        %885 = vmatpush1.msra.mxu0 %v807
        %886 = vmatprep.subr.mxu0 %v810
        %887 = vmatpush1.msra.mxu0 %v809
        %888 = vmatprep.subr.mxu0 %v812
        %889 = vmatpush1.msra.mxu0 %v811
        %890 = vmatprep.subr.mxu0 %v814
        %891 = vmatpush1.msra.mxu0 %v813
        %892 = vmatprep.subr.mxu0 %v816
        %893 = vmatpush1.msra.mxu0 %v815
        %894 = vmatprep.subr.mxu0 %v818
        %895 = vmatpush1.msra.mxu0 %v817
        %896 = vmatprep.subr.mxu0 %v820
        %897 = vmatpush1.msra.mxu0 %v819
        %898 = vmatprep.subr.mxu0 %v822
        %899 = vmatpush1.msra.mxu0 %v821
        %900 = vmatprep.mubr.f32.mxu0 %v754
        %901 = vmatmul.mubr.f32.gmra.mrb[0].mxu0 %v753
        %v902 = vpop.f32.mrb[0].mxu0
        %v903 = vadd.f32 0.0, %v902
        %v904 = vpop.f32.mrb[0].mxu0
        %v905 = vadd.f32 0.0, %v904
        %906 = vmatprep.mubr.f32.mxu0 %v757
        %907 = vmatmul.mubr.f32.gmra.mrb[0].mxu0 %v756
        %v908 = vpop.f32.mrb[0].mxu0
        %v909 = vadd.f32 0.0, %v908
        %v910 = vpop.f32.mrb[0].mxu0
        %v911 = vadd.f32 0.0, %v910
        %912 = vdwg.mxu0
        %913 = vmatprep.subr.mxu0 %v824
        %914 = vmatpush1.msra.mxu0 %v823
        %915 = vmatprep.subr.mxu0 %v826
        %916 = vmatpush1.msra.mxu0 %v825
        %917 = vmatprep.subr.mxu0 %v828
        %918 = vmatpush1.msra.mxu0 %v827
        %919 = vmatprep.subr.mxu0 0.0
        %920 = vmatpush1.msra.mxu0 0.0
        %921 = vmatprep.subr.mxu0 0.0
        %922 = vmatpush1.msra.mxu0 0.0
        %923 = vmatprep.subr.mxu0 0.0
        %924 = vmatpush1.msra.mxu0 0.0
        %925 = vmatprep.subr.mxu0 0.0
        %926 = vmatpush1.msra.mxu0 0.0
        %927 = vmatprep.subr.mxu0 0.0
        %928 = vmatpush1.msra.mxu0 0.0
        %929 = vmatprep.subr.mxu0 0.0
        %930 = vmatpush1.msra.mxu0 0.0
        %931 = vmatprep.subr.mxu0 0.0
        %932 = vmatpush1.msra.mxu0 0.0
        %933 = vmatprep.subr.mxu0 0.0
        %934 = vmatpush1.msra.mxu0 0.0
        %935 = vmatprep.subr.mxu0 0.0
        %936 = vmatpush1.msra.mxu0 0.0
        %937 = vmatprep.subr.mxu0 0.0
        %938 = vmatpush1.msra.mxu0 0.0
        %939 = vmatprep.subr.mxu0 0.0
        %940 = vmatpush1.msra.mxu0 0.0
        %941 = vmatprep.subr.mxu0 0.0
        %942 = vmatpush1.msra.mxu0 0.0
        %943 = vmatprep.subr.mxu0 0.0
        %944 = vmatpush1.msra.mxu0 0.0
        %945 = vmatprep.subr.mxu0 0.0
        %946 = vmatpush1.msra.mxu0 0.0
        %947 = vmatprep.subr.mxu0 0.0
        %948 = vmatpush1.msra.mxu0 0.0
        %949 = vmatprep.subr.mxu0 0.0
        %950 = vmatpush1.msra.mxu0 0.0
        %951 = vmatprep.subr.mxu0 0.0
        %952 = vmatpush1.msra.mxu0 0.0
        %953 = vmatprep.subr.mxu0 0.0
        %954 = vmatpush1.msra.mxu0 0.0
        %955 = vmatprep.subr.mxu0 0.0
        %956 = vmatpush1.msra.mxu0 0.0
        %957 = vmatprep.subr.mxu0 0.0
        %958 = vmatpush1.msra.mxu0 0.0
        %959 = vmatprep.subr.mxu0 0.0
        %960 = vmatpush1.msra.mxu0 0.0
        %961 = vmatprep.subr.mxu0 0.0
        %962 = vmatpush1.msra.mxu0 0.0
        %963 = vmatprep.subr.mxu0 0.0
        %964 = vmatpush1.msra.mxu0 0.0
        %965 = vmatprep.subr.mxu0 0.0
        %966 = vmatpush1.msra.mxu0 0.0
        %967 = vmatprep.subr.mxu0 0.0
        %968 = vmatpush1.msra.mxu0 0.0
        %969 = vmatprep.subr.mxu0 0.0
        %970 = vmatpush1.msra.mxu0 0.0
        %971 = vmatprep.subr.mxu0 0.0
        %972 = vmatpush1.msra.mxu0 0.0
        %973 = vmatprep.subr.mxu0 0.0
        %974 = vmatpush1.msra.mxu0 0.0
        %975 = vmatprep.subr.mxu0 0.0
        %976 = vmatpush1.msra.mxu0 0.0
        %977 = vmatprep.mubr.f32.mxu0 0.0
        %978 = vmatmul.mubr.f32.gmra.mrb[0].mxu0 %v831
        %v979 = vpop.f32.mrb[0].mxu0
        %v980 = vadd.f32 %v903, %v979
        %v981 = vpop.f32.mrb[0].mxu0
        %v982 = vadd.f32 %v905, %v981
        %983 = vmatprep.mubr.f32.mxu0 0.0
        %984 = vmatmul.mubr.f32.gmra.mrb[0].mxu0 %v834
        %v985 = vpop.f32.mrb[0].mxu0
        %v986 = vadd.f32 %v909, %v985
        %v987 = vpop.f32.mrb[0].mxu0
        %v988 = vadd.f32 %v911, %v987
        %989 = vdwg.mxu0
        %v990 = vtanh.pop %v980
        %v991 = vtanh.pop %v982
        %992 = vst [vmem:[%s232] sm:$0xff] %v990
        %993 = vst [vmem:[%s232 + $0x8] sm:$0xff] %v991
        %v994 = vmul.f32 %v986, 0.5
        %v995 = vmul.f32 %v988, 0.5
        %v996 = vtanh.pop %v994
        %v997 = vtanh.pop %v995
        %v998 = vmul.f32 %v996, 0.5
        %v999 = vmul.f32 %v997, 0.5
        %v1000 = vadd.f32 %v998, 0.5
        %v1001 = vadd.f32 %v999, 0.5
        %1002 = vst [vmem:[%s232 + $0x10] sm:$0xff] %v1000
        %1003 = vst [vmem:[%s232 + $0x18] sm:$0xff] %v1001
        %s1004 = sand.u32 %s113, 1
        %s1005 = sand.u32 %s113, 1
        %s1006 = smul.addr %s1005, 32
        %s1007 = scalar_lea.vmem [#allocation6], %s1006
        // Predicated region
        $region64: #{decoder_forward.1} parent=54 // pred_check
          %p1008 = pneg %p123
        $region65: #{decoder_forward.1} parent=54 // pred_check_branch
          %1010 = sbr.rel (%p1008) target = $region67
        $region66: #{decoder_forward.1} parent=54 // pred_region
          %s1011 = smul.u32 2, %s16
          %s1012 = smul.addr %s1011, 8
          %s1013 = scalar_lea.vmem %s4, %s1012
          // Predicated region
          $region68: #{decoder_forward.1} parent=66 // pred_check
            _
          $region69: #{decoder_forward.1} parent=66 // pred_check_branch
            %1015 = sbr.rel (0) target = $region71
          $region70: #{decoder_forward.1} parent=66 // pred_region
            // Predicated region
            $region72: #{decoder_forward.1} parent=70 // pred_check
              _
            $region73: #{decoder_forward.1} parent=70 // pred_check_branch
              %1017 = sbr.rel (0) target = $region75
            $region74: #{decoder_forward.1} parent=70 // pred_region
              loop: start=0, step=1, limit=1
              $region76: #{decoder_forward.1} parent=74 // loop_pre_header
                _
              $region77: #{decoder_forward.1} parent=74 // loop_header
                %s1019 = sphi 0, %s1023
                %p1020 = scmp.ge.s32.totalorder %s1019, 1
                %s1024 = sphi %s1007, %s1007
                %s1025 = sphi %s1013, %s1013
              $region78: #{decoder_forward.1} parent=74 // loop_header_branch
                %1022 = sbr.rel (%p1020) target = $region82
              $region79: #{decoder_forward.1} parent=74 // loop_body
                %v1026 = vld [vmem:[%s1024] sm:$0xff]
                %1027 = vst [vmem:[%s1025] sm:$0xff] %v1026
                %v1028 = vld [vmem:[%s1024 + $0x8] sm:$0xff]
                %1029 = vst [vmem:[%s1025 + $0x8] sm:$0xff] %v1028
                %v1030 = vld [vmem:[%s1024 + $0x10] sm:$0xff]
                %1031 = vst [vmem:[%s1025 + $0x20] sm:$0xff] %v1030
                %v1032 = vld [vmem:[%s1024 + $0x18] sm:$0xff]
                %1033 = vst [vmem:[%s1025 + $0x28] sm:$0xff] %v1032
              $region80: #{decoder_forward.1} parent=74 // loop_footer
                %s1023 = sadd.s32 1, %s1019
              $region81: #{decoder_forward.1} parent=74 // loop_footer_branch
                %1018 = sbr.rel target = $region77
              $region82: #{decoder_forward.1} parent=74 // loop_exit
                _
            $region75: #{decoder_forward.1} parent=70 // pred_fallthru
              _
            // Predicated region
            $region83: #{decoder_forward.1} parent=70 // pred_check
              _
            $region84: #{decoder_forward.1} parent=70 // pred_check_branch
              %1035 = sbr.rel target = $region86
            $region85: #{decoder_forward.1} parent=70 // pred_region
              _
            $region86: #{decoder_forward.1} parent=70 // pred_fallthru
              _
          $region71: #{decoder_forward.1} parent=66 // pred_fallthru
            _
          %1036 = vnop
        $region67: #{decoder_forward.1} parent=54 // pred_fallthru
          _
      $region55: #{decoder_forward.1} parent=5 // pred_fallthru
        _
      %p1037 = scmp.le.s32.totalorder 2, %s11
      // Predicated region
      $region87: #{decoder_forward.1} parent=5 // pred_check
        %p1038 = pneg %p1037
      $region88: #{decoder_forward.1} parent=5 // pred_check_branch
        %1040 = sbr.rel (%p1038) target = $region90
      $region89: #{decoder_forward.1} parent=5 // pred_region
        %s1041 = ssub.s32 %s11, 2
        // Predicated region
        $region91: #{decoder_forward.1} parent=89 // pred_check
          %p1042 = pneg %p129
        $region92: #{decoder_forward.1} parent=89 // pred_check_branch
          %1044 = sbr.rel (%p1042) target = $region94
        $region93: #{decoder_forward.1} parent=89 // pred_region
          %s1045 = sand.u32 %s114, 1
          %s1046 = sand.u32 %s114, 1
          %s1047 = smul.addr %s1046, 32
          %s1048 = scalar_lea.vmem [#allocation6], %s1047
        $region94: #{decoder_forward.1} parent=89 // pred_fallthru
          _
      $region90: #{decoder_forward.1} parent=5 // pred_fallthru
        _
    $region6: #{decoder_forward.1} parent=1 // loop_footer
      %s15 = sadd.s32 1, %s11
    $region7: #{decoder_forward.1} parent=1 // loop_footer_branch
      %10 = sbr.rel target = $region3
    $region8: #{decoder_forward.1} parent=1 // loop_exit
      _
    %1049 = vsyncpa [#allocation5], 1
    %s1050 = scalar_lea.sflag [#allocation5], 1
    %1051 = vsyncpa %s1050, 1

</llo_original>
